<compile_context>
chip_gen: v6e
topology: v6e:2x2x1
jax: 0.10.0
libtpu: 0.0.40
codegen_flags: <defaults>
</compile_context>

<pallas_src>
import functools
import math

import jax
import jax.numpy as jnp
from jax.experimental import pallas as pl
from jax.experimental.pallas import tpu as pltpu


# ----------------------------------------------------------------------------
# Fused Pallas kernels
# ----------------------------------------------------------------------------

def _attn_block_kernel(q_in_ref, kv_in_ref, mask_ref,
                       wq_ref, bq_ref, wkv_ref, bkv_ref,
                       wo_ref, bo_ref, g_ref, beta_ref,
                       o_ref, *, heads, scale, eps):
    """Fused: Q/K/V projections + multi-head attention + out-proj + add&LayerNorm.

    One grid step == one batch element; all heads handled in-kernel with
    static lane slices (no per-head grid, no host-side transposes).
    """
    x_q = q_in_ref[0]                  # (Lq, E)
    x_kv = kv_in_ref[0]                # (Lk, E)
    m = mask_ref[0]                    # (Lq, Lk)
    E = x_q.shape[-1]
    D = E // heads

    q = jnp.dot(x_q, wq_ref[...], preferred_element_type=jnp.float32) + bq_ref[...]
    kv = jnp.dot(x_kv, wkv_ref[...], preferred_element_type=jnp.float32) + bkv_ref[...]
    k = kv[:, :E]                      # keys projection
    v = kv[:, E:]                      # values projection

    head_outs = []
    for h in range(heads):             # static python loop, heads is small
        sl = slice(h * D, (h + 1) * D)
        qh = q[:, sl]                  # (Lq, D)
        kh = k[:, sl]                  # (Lk, D)
        vh = v[:, sl]                  # (Lk, D)
        energy = jnp.dot(qh, kh.T, preferred_element_type=jnp.float32)  # (Lq, Lk)
        # masked_fill(mask == 0, -1e20) BEFORE the 1/sqrt(embed_size) scaling,
        # exactly as the PyTorch reference does.
        energy = jnp.where(m == 0.0, jnp.float32(-1e20), energy)
        energy = energy * scale
        energy = energy - jnp.max(energy, axis=-1, keepdims=True)
        p = jnp.exp(energy)
        denom = jnp.sum(p, axis=-1, keepdims=True)
        # NOTE: a fully-masked query row gives denom == Lk (all exp(0)),
        # same behaviour as the PyTorch reference (no NaN).
        p = p * pl.reciprocal(denom, approx=True)
        head_outs.append(jnp.dot(p, vh, preferred_element_type=jnp.float32))
    attn = jnp.concatenate(head_outs, axis=-1)            # (Lq, E)

    proj = jnp.dot(attn, wo_ref[...], preferred_element_type=jnp.float32) + bo_ref[...]
    y = proj + x_q                                         # residual = query input
    mean = jnp.mean(y, axis=-1, keepdims=True)
    var = jnp.mean((y - mean) * (y - mean), axis=-1, keepdims=True)
    yn = (y - mean) * jax.lax.rsqrt(var + eps)
    o_ref[0] = yn * g_ref[...] + beta_ref[...]


def attention_block(q_in, kv_in, mask, p, gamma, beta, heads, embed_size,
                    eps=1e-5):
    """q_in: (N, Lq, E), kv_in: (N, Lk, E), mask broadcastable to (N,1,Lq,Lk).

    Returns LayerNorm(out_proj(MHA(q_in, kv_in, kv_in, mask)) + q_in).
    """
    N, Lq, E = q_in.shape
    Lk = kv_in.shape[1]
    # Single per-batch mask, no per-head duplication in HBM.
    m = jnp.broadcast_to(mask.astype(jnp.float32),
                         (N, 1, Lq, Lk)).reshape(N, Lq, Lk)
    scale = 1.0 / math.sqrt(float(embed_size))
    kern = functools.partial(_attn_block_kernel, heads=heads, scale=scale,
                             eps=eps)
    full = lambda n: (0, 0)
    return pl.pallas_call(
        kern,
        out_shape=jax.ShapeDtypeStruct((N, Lq, E), jnp.float32),
        grid=(N,),
        in_specs=[
            pl.BlockSpec((1, Lq, E), lambda n: (n, 0, 0)),    # q_in
            pl.BlockSpec((1, Lk, E), lambda n: (n, 0, 0)),    # kv_in
            pl.BlockSpec((1, Lq, Lk), lambda n: (n, 0, 0)),   # mask
            pl.BlockSpec((E, E), full),                       # wq
            pl.BlockSpec((1, E), full),                       # bq
            pl.BlockSpec((E, 2 * E), full),                   # wkv
            pl.BlockSpec((1, 2 * E), full),                   # bkv
            pl.BlockSpec((E, E), full),                       # wo
            pl.BlockSpec((1, E), full),                       # bo
            pl.BlockSpec((1, E), full),                       # gamma
            pl.BlockSpec((1, E), full),                       # beta
        ],
        out_specs=pl.BlockSpec((1, Lq, E), lambda n: (n, 0, 0)),
        compiler_params=pltpu.CompilerParams(
            dimension_semantics=("parallel",)),
    )(q_in, kv_in, m,
      p["wq"], p["bq"].reshape(1, E),
      p["wkv"], p["bkv"].reshape(1, 2 * E),
      p["wo"], p["bo"].reshape(1, E),
      gamma.reshape(1, E), beta.reshape(1, E))


def _ffn_ln_kernel(x_ref, w1_ref, b1_ref, w2_ref, b2_ref, g_ref, beta_ref,
                   o_ref, *, eps):
    # LayerNorm(relu(x @ W1 + b1) @ W2 + b2 + x)
    x = x_ref[...]
    h = jnp.dot(x, w1_ref[...], preferred_element_type=jnp.float32) + b1_ref[...]
    h = jnp.maximum(h, 0.0)
    f = jnp.dot(h, w2_ref[...], preferred_element_type=jnp.float32) + b2_ref[...]
    y = f + x
    mean = jnp.mean(y, axis=-1, keepdims=True)
    var = jnp.mean((y - mean) * (y - mean), axis=-1, keepdims=True)
    yn = (y - mean) * jax.lax.rsqrt(var + eps)
    o_ref[...] = yn * g_ref[...] + beta_ref[...]


def ffn_layernorm(x, w1, b1, w2, b2, gamma, beta, eps=1e-5):
    """x: (M, E) -> LayerNorm(FFN(x) + x) : (M, E)."""
    M, E = x.shape
    F = w1.shape[1]
    kern = functools.partial(_ffn_ln_kernel, eps=eps)
    return pl.pallas_call(
        kern,
        out_shape=jax.ShapeDtypeStruct((M, E), jnp.float32),
        grid=(1,),
        in_specs=[pl.BlockSpec((M, E), lambda i: (0, 0)),
                  pl.BlockSpec((E, F), lambda i: (0, 0)),
                  pl.BlockSpec((1, F), lambda i: (0, 0)),
                  pl.BlockSpec((F, E), lambda i: (0, 0)),
                  pl.BlockSpec((1, E), lambda i: (0, 0)),
                  pl.BlockSpec((1, E), lambda i: (0, 0)),
                  pl.BlockSpec((1, E), lambda i: (0, 0))],
        out_specs=pl.BlockSpec((M, E), lambda i: (0, 0)),
    )(x, w1, b1.reshape(1, F), w2, b2.reshape(1, E),
      gamma.reshape(1, E), beta.reshape(1, E))


def _proj_kernel(x_ref, w_ref, b_ref, o_ref):
    o_ref[...] = (jnp.dot(x_ref[...], w_ref[...],
                          preferred_element_type=jnp.float32) + b_ref[...])


def vocab_projection(x, w, b):
    """x: (M, E), w: (E, V) -> (M, V).

    Vocab dim is zero-padded to a multiple of 128 so the output store is
    lane-dense (unmasked vst); the padding is sliced off in the wrapper.
    """
    M, E = x.shape
    V = w.shape[1]
    Vp = max(128, ((V + 127) // 128) * 128)
    w_p = jnp.pad(w, ((0, 0), (0, Vp - V)))
    b_p = jnp.pad(b, (0, Vp - V)).reshape(1, Vp)
    out = pl.pallas_call(
        _proj_kernel,
        out_shape=jax.ShapeDtypeStruct((M, Vp), jnp.float32),
        grid=(1,),
        in_specs=[pl.BlockSpec((M, E), lambda i: (0, 0)),
                  pl.BlockSpec((E, Vp), lambda i: (0, 0)),
                  pl.BlockSpec((1, Vp), lambda i: (0, 0))],
        out_specs=pl.BlockSpec((M, Vp), lambda i: (0, 0)),
    )(x, w_p, b_p)
    return out[:, :V]


# ----------------------------------------------------------------------------
# Module composition (3 pallas_calls per decoder block + final projection)
# ----------------------------------------------------------------------------

def decoder_block(p, x, enc_out, src_mask, trg_mask, heads, embed_size):
    N, L, E = x.shape
    # DecoderBlock.attention + DecoderBlock.norm (residual = x)
    query = attention_block(x, x, trg_mask, p["self_attn"],
                            p["norm_g"], p["norm_b"], heads, embed_size)
    tb = p["tblock"]
    # TransformerBlock.attention (K/V = enc_out) + norm1 (residual = query)
    h = attention_block(query, enc_out, src_mask, tb["attn"],
                        tb["norm1_g"], tb["norm1_b"], heads, embed_size)
    # TransformerBlock.feed_forward + norm2 (residual = h)
    out = ffn_layernorm(h.reshape(N * L, E), tb["w1"], tb["b1"],
                        tb["w2"], tb["b2"], tb["norm2_g"], tb["norm2_b"])
    return out.reshape(N, L, E)


@functools.partial(jax.jit, static_argnames=("heads", "embed_size"))
def decoder_forward(params, tokens, enc_out, src_mask, trg_mask,
                    heads, embed_size):
    N, L = tokens.shape
    positions = jnp.arange(L, dtype=jnp.int32)
    # embedding gather + add (glue); dropout == identity
    x = (jnp.take(params["word_emb"], tokens, axis=0)
         + jnp.take(params["pos_emb"], positions, axis=0)[None, :, :])
    for lp in params["layers"]:
        x = decoder_block(lp, x, enc_out, src_mask, trg_mask, heads, embed_size)
    out = vocab_projection(x.reshape(N * L, embed_size),
                           params["fc_w"], params["fc_b"])
    V = params["fc_w"].shape[1]
    return out.reshape(N, L, V)


# ----------------------------------------------------------------------------
# Deterministic parameter construction
# ----------------------------------------------------------------------------

def _dense(key, fan_in, fan_out):
    kw, kb = jax.random.split(key)
    w = jax.random.normal(kw, (fan_in, fan_out), jnp.float32) * 0.02
    b = jax.random.normal(kb, (fan_out,), jnp.float32) * 0.02
    return w, b


def make_params(key, vocab, embed_size, num_layers, heads, forward_expansion,
                max_length):
    ks = jax.random.split(key, 3 + num_layers)
    params = {
        "word_emb": jax.random.normal(ks[0], (vocab, embed_size), jnp.float32) * 0.02,
        "pos_emb": jax.random.normal(ks[1], (max_length, embed_size), jnp.float32) * 0.02,
        "layers": [],
    }
    fw, fb = _dense(ks[2], embed_size, vocab)
    params["fc_w"], params["fc_b"] = fw, fb

    def make_attn(k):
        kk = jax.random.split(k, 4)
        wv, bv = _dense(kk[0], embed_size, embed_size)
        wk, bk = _dense(kk[1], embed_size, embed_size)
        wq, bq = _dense(kk[2], embed_size, embed_size)
        wo, bo = _dense(kk[3], embed_size, embed_size)
        # K and V projections fused into one (E, 2E) matmul: [K | V].
        return {"wq": wq, "bq": bq,
                "wkv": jnp.concatenate([wk, wv], axis=1),
                "bkv": jnp.concatenate([bk, bv], axis=0),
                "wo": wo, "bo": bo}

    F = forward_expansion * embed_size
    for li in range(num_layers):
        kk = jax.random.split(ks[3 + li], 4)
        w1, b1 = _dense(kk[2], embed_size, F)
        w2, b2 = _dense(kk[3], F, embed_size)
        layer = {
            "self_attn": make_attn(kk[0]),
            "norm_g": jnp.ones((embed_size,), jnp.float32),
            "norm_b": jnp.zeros((embed_size,), jnp.float32),
            "tblock": {
                "attn": make_attn(kk[1]),
                "norm1_g": jnp.ones((embed_size,), jnp.float32),
                "norm1_b": jnp.zeros((embed_size,), jnp.float32),
                "norm2_g": jnp.ones((embed_size,), jnp.float32),
                "norm2_b": jnp.zeros((embed_size,), jnp.float32),
                "w1": w1, "b1": b1, "w2": w2, "b2": b2,
            },
        }
        params["layers"].append(layer)
    return params


# ----------------------------------------------------------------------------
# Main
# ----------------------------------------------------------------------------

if __name__ == "__main__":
    trg_vocab_size = 50
    embed_size = 32
    num_layers = 2
    heads = 4
    forward_expansion = 4
    max_length = 16

    N = 2           # batch
    trg_len = 8     # decoder sequence length
    src_len = 8     # encoder sequence length

    key = jax.random.PRNGKey(0)
    kp, kt, ke = jax.random.split(key, 3)

    params = make_params(kp, trg_vocab_size, embed_size, num_layers, heads,
                         forward_expansion, max_length)

    tokens = jax.random.randint(kt, (N, trg_len), 0, trg_vocab_size,
                                dtype=jnp.int32)
    enc_out = jax.random.normal(ke, (N, src_len, embed_size), jnp.float32)

    # Masks as in the usual Transformer usage of this Decoder:
    # src_mask: (N, 1, 1, src_len) all ones; trg_mask: (N, 1, L, L) causal.
    src_mask = jnp.ones((N, 1, 1, src_len), jnp.float32)
    trg_mask = jnp.tril(jnp.ones((trg_len, trg_len), jnp.float32))[None, None]
    trg_mask = jnp.broadcast_to(trg_mask, (N, 1, trg_len, trg_len))

    out = decoder_forward(params, tokens, enc_out, src_mask, trg_mask,
                          heads, embed_size)
    out = jax.block_until_ready(out)
    assert out.shape == (N, trg_len, trg_vocab_size)
    assert jnp.all(jnp.isfinite(out))
    print("KERNEL_OK")
</pallas_src>

<mosaic_0001>
module attributes {stable_mosaic.version = 11 : i64} {
  func.func @_attn_block_kernel(%arg0: i32, %arg1: memref<1x8x32xf32, #tpu.memory_space<vmem>>, %arg2: memref<1x8x32xf32, #tpu.memory_space<vmem>>, %arg3: memref<1x8x8xf32, #tpu.memory_space<vmem>>, %arg4: memref<32x32xf32, #tpu.memory_space<vmem>>, %arg5: memref<1x32xf32, #tpu.memory_space<vmem>>, %arg6: memref<32x64xf32, #tpu.memory_space<vmem>>, %arg7: memref<1x64xf32, #tpu.memory_space<vmem>>, %arg8: memref<32x32xf32, #tpu.memory_space<vmem>>, %arg9: memref<1x32xf32, #tpu.memory_space<vmem>>, %arg10: memref<1x32xf32, #tpu.memory_space<vmem>>, %arg11: memref<1x32xf32, #tpu.memory_space<vmem>>, %arg12: memref<1x8x32xf32, #tpu.memory_space<vmem>>) attributes {dimension_semantics = [#tpu.dimension_semantics<parallel>], iteration_bounds = array<i64: 2>, scalar_prefetch = 0 : i64, scratch_operands = 0 : i64, tpu.core_type = #tpu.core_type<tc>, window_params = [{transform_indices = @transform_0, window_bounds = array<i64: 1, 8, 32>}, {transform_indices = @transform_1, window_bounds = array<i64: 1, 8, 32>}, {transform_indices = @transform_2, window_bounds = array<i64: 1, 8, 8>}, {pipeline_mode = #tpu.pipeline_mode<synchronous>, transform_indices = @transform_3, window_bounds = array<i64: 32, 32>}, {pipeline_mode = #tpu.pipeline_mode<synchronous>, transform_indices = @transform_4, window_bounds = array<i64: 1, 32>}, {pipeline_mode = #tpu.pipeline_mode<synchronous>, transform_indices = @transform_5, window_bounds = array<i64: 32, 64>}, {pipeline_mode = #tpu.pipeline_mode<synchronous>, transform_indices = @transform_6, window_bounds = array<i64: 1, 64>}, {pipeline_mode = #tpu.pipeline_mode<synchronous>, transform_indices = @transform_7, window_bounds = array<i64: 32, 32>}, {pipeline_mode = #tpu.pipeline_mode<synchronous>, transform_indices = @transform_8, window_bounds = array<i64: 1, 32>}, {pipeline_mode = #tpu.pipeline_mode<synchronous>, transform_indices = @transform_9, window_bounds = array<i64: 1, 32>}, {pipeline_mode = #tpu.pipeline_mode<synchronous>, transform_indices = @transform_10, window_bounds = array<i64: 1, 32>}, {transform_indices = @transform_11, window_bounds = array<i64: 1, 8, 32>}]} {
    %c0 = arith.constant 0 : index
    %c0_0 = arith.constant 0 : index
    %c0_1 = arith.constant 0 : index
    %0 = vector.load %arg1[%c0, %c0_0, %c0_1] : memref<1x8x32xf32, #tpu.memory_space<vmem>>, vector<1x8x32xf32>
    %1 = vector.shape_cast %0 : vector<1x8x32xf32> to vector<8x32xf32>
    %c0_2 = arith.constant 0 : index
    %c0_3 = arith.constant 0 : index
    %c0_4 = arith.constant 0 : index
    %2 = vector.load %arg2[%c0_2, %c0_3, %c0_4] : memref<1x8x32xf32, #tpu.memory_space<vmem>>, vector<1x8x32xf32>
    %3 = vector.shape_cast %2 : vector<1x8x32xf32> to vector<8x32xf32>
    %c0_5 = arith.constant 0 : index
    %c0_6 = arith.constant 0 : index
    %c0_7 = arith.constant 0 : index
    %4 = vector.load %arg3[%c0_5, %c0_6, %c0_7] : memref<1x8x8xf32, #tpu.memory_space<vmem>>, vector<1x8x8xf32>
    %5 = vector.shape_cast %4 : vector<1x8x8xf32> to vector<8x8xf32>
    %c0_8 = arith.constant 0 : index
    %c0_9 = arith.constant 0 : index
    %6 = vector.load %arg4[%c0_8, %c0_9] : memref<32x32xf32, #tpu.memory_space<vmem>>, vector<32x32xf32>
    %cst = arith.constant dense<0.000000e+00> : vector<8x32xf32>
    %7 = tpu.matmul %1, %6, %cst {dimension_numbers = #tpu.dot_dimension_numbers<[1], [0], [0], [1], [0, 0, 1, 1], [], []>} : vector<8x32xf32>, vector<32x32xf32>, vector<8x32xf32> -> vector<8x32xf32>
    %c0_10 = arith.constant 0 : index
    %c0_11 = arith.constant 0 : index
    %8 = vector.load %arg5[%c0_10, %c0_11] : memref<1x32xf32, #tpu.memory_space<vmem>>, vector<1x32xf32>
    %9 = vector.broadcast %8 : vector<1x32xf32> to vector<8x32xf32>
    %10 = arith.addf %7, %9 : vector<8x32xf32>
    %c0_12 = arith.constant 0 : index
    %c0_13 = arith.constant 0 : index
    %11 = vector.load %arg6[%c0_12, %c0_13] : memref<32x64xf32, #tpu.memory_space<vmem>>, vector<32x64xf32>
    %cst_14 = arith.constant dense<0.000000e+00> : vector<8x64xf32>
    %12 = tpu.matmul %3, %11, %cst_14 {dimension_numbers = #tpu.dot_dimension_numbers<[1], [0], [0], [1], [0, 0, 1, 1], [], []>} : vector<8x32xf32>, vector<32x64xf32>, vector<8x64xf32> -> vector<8x64xf32>
    %c0_15 = arith.constant 0 : index
    %c0_16 = arith.constant 0 : index
    %13 = vector.load %arg7[%c0_15, %c0_16] : memref<1x64xf32, #tpu.memory_space<vmem>>, vector<1x64xf32>
    %14 = vector.broadcast %13 : vector<1x64xf32> to vector<8x64xf32>
    %15 = arith.addf %12, %14 : vector<8x64xf32>
    %16 = vector.extract_strided_slice %15 {offsets = [0, 0], sizes = [8, 32], strides = [1, 1]} : vector<8x64xf32> to vector<8x32xf32>
    %17 = vector.extract_strided_slice %15 {offsets = [0, 32], sizes = [8, 32], strides = [1, 1]} : vector<8x64xf32> to vector<8x32xf32>
    %18 = vector.extract_strided_slice %10 {offsets = [0, 0], sizes = [8, 8], strides = [1, 1]} : vector<8x32xf32> to vector<8x8xf32>
    %19 = vector.extract_strided_slice %16 {offsets = [0, 0], sizes = [8, 8], strides = [1, 1]} : vector<8x32xf32> to vector<8x8xf32>
    %20 = vector.extract_strided_slice %17 {offsets = [0, 0], sizes = [8, 8], strides = [1, 1]} : vector<8x32xf32> to vector<8x8xf32>
    %21 = tpu.transpose %19, [1, 0] : vector<8x8xf32> -> vector<8x8xf32>
    %cst_17 = arith.constant dense<0.000000e+00> : vector<8x8xf32>
    %22 = tpu.matmul %18, %21, %cst_17 {dimension_numbers = #tpu.dot_dimension_numbers<[1], [0], [0], [1], [0, 0, 1, 1], [], []>} : vector<8x8xf32>, vector<8x8xf32>, vector<8x8xf32> -> vector<8x8xf32>
    %cst_18 = arith.constant 0.000000e+00 : f32
    %23 = vector.broadcast %cst_18 : f32 to vector<8x8xf32>
    %24 = arith.cmpf oeq, %5, %23 : vector<8x8xf32>
    %cst_19 = arith.constant -1.000000e+20 : f32
    %25 = vector.broadcast %cst_19 : f32 to vector<8x8xf32>
    %26 = arith.select %24, %25, %22 : vector<8x8xi1>, vector<8x8xf32>
    %cst_20 = arith.constant 0.176776692 : f32
    %27 = vector.broadcast %cst_20 : f32 to vector<8x8xf32>
    %28 = arith.mulf %26, %27 : vector<8x8xf32>
    %cst_21 = arith.constant dense<0xFF800000> : vector<8xf32>
    %29 = vector.multi_reduction <maximumf>, %28, %cst_21 [1] : vector<8x8xf32> to vector<8xf32>
    %30 = vector.shape_cast %29 : vector<8xf32> to vector<8x1xf32>
    %31 = vector.broadcast %30 : vector<8x1xf32> to vector<8x8xf32>
    %32 = arith.subf %28, %31 : vector<8x8xf32>
    %33 = math.exp %32 : vector<8x8xf32>
    %cst_22 = arith.constant dense<0.000000e+00> : vector<8xf32>
    %34 = vector.multi_reduction <add>, %33, %cst_22 [1] : vector<8x8xf32> to vector<8xf32>
    %35 = vector.shape_cast %34 : vector<8xf32> to vector<8x1xf32>
    %36 = tpu.reciprocal %35 {approx = true} : vector<8x1xf32> -> vector<8x1xf32>
    %37 = vector.broadcast %36 : vector<8x1xf32> to vector<8x8xf32>
    %38 = arith.mulf %33, %37 : vector<8x8xf32>
    %cst_23 = arith.constant dense<0.000000e+00> : vector<8x8xf32>
    %39 = tpu.matmul %38, %20, %cst_23 {dimension_numbers = #tpu.dot_dimension_numbers<[1], [0], [0], [1], [0, 0, 1, 1], [], []>} : vector<8x8xf32>, vector<8x8xf32>, vector<8x8xf32> -> vector<8x8xf32>
    %40 = vector.extract_strided_slice %10 {offsets = [0, 8], sizes = [8, 8], strides = [1, 1]} : vector<8x32xf32> to vector<8x8xf32>
    %41 = vector.extract_strided_slice %16 {offsets = [0, 8], sizes = [8, 8], strides = [1, 1]} : vector<8x32xf32> to vector<8x8xf32>
    %42 = vector.extract_strided_slice %17 {offsets = [0, 8], sizes = [8, 8], strides = [1, 1]} : vector<8x32xf32> to vector<8x8xf32>
    %43 = tpu.transpose %41, [1, 0] : vector<8x8xf32> -> vector<8x8xf32>
    %cst_24 = arith.constant dense<0.000000e+00> : vector<8x8xf32>
    %44 = tpu.matmul %40, %43, %cst_24 {dimension_numbers = #tpu.dot_dimension_numbers<[1], [0], [0], [1], [0, 0, 1, 1], [], []>} : vector<8x8xf32>, vector<8x8xf32>, vector<8x8xf32> -> vector<8x8xf32>
    %cst_25 = arith.constant 0.000000e+00 : f32
    %45 = vector.broadcast %cst_25 : f32 to vector<8x8xf32>
    %46 = arith.cmpf oeq, %5, %45 : vector<8x8xf32>
    %cst_26 = arith.constant -1.000000e+20 : f32
    %47 = vector.broadcast %cst_26 : f32 to vector<8x8xf32>
    %48 = arith.select %46, %47, %44 : vector<8x8xi1>, vector<8x8xf32>
    %cst_27 = arith.constant 0.176776692 : f32
    %49 = vector.broadcast %cst_27 : f32 to vector<8x8xf32>
    %50 = arith.mulf %48, %49 : vector<8x8xf32>
    %cst_28 = arith.constant dense<0xFF800000> : vector<8xf32>
    %51 = vector.multi_reduction <maximumf>, %50, %cst_28 [1] : vector<8x8xf32> to vector<8xf32>
    %52 = vector.shape_cast %51 : vector<8xf32> to vector<8x1xf32>
    %53 = vector.broadcast %52 : vector<8x1xf32> to vector<8x8xf32>
    %54 = arith.subf %50, %53 : vector<8x8xf32>
    %55 = math.exp %54 : vector<8x8xf32>
    %cst_29 = arith.constant dense<0.000000e+00> : vector<8xf32>
    %56 = vector.multi_reduction <add>, %55, %cst_29 [1] : vector<8x8xf32> to vector<8xf32>
    %57 = vector.shape_cast %56 : vector<8xf32> to vector<8x1xf32>
    %58 = tpu.reciprocal %57 {approx = true} : vector<8x1xf32> -> vector<8x1xf32>
    %59 = vector.broadcast %58 : vector<8x1xf32> to vector<8x8xf32>
    %60 = arith.mulf %55, %59 : vector<8x8xf32>
    %cst_30 = arith.constant dense<0.000000e+00> : vector<8x8xf32>
    %61 = tpu.matmul %60, %42, %cst_30 {dimension_numbers = #tpu.dot_dimension_numbers<[1], [0], [0], [1], [0, 0, 1, 1], [], []>} : vector<8x8xf32>, vector<8x8xf32>, vector<8x8xf32> -> vector<8x8xf32>
    %62 = vector.extract_strided_slice %10 {offsets = [0, 16], sizes = [8, 8], strides = [1, 1]} : vector<8x32xf32> to vector<8x8xf32>
    %63 = vector.extract_strided_slice %16 {offsets = [0, 16], sizes = [8, 8], strides = [1, 1]} : vector<8x32xf32> to vector<8x8xf32>
    %64 = vector.extract_strided_slice %17 {offsets = [0, 16], sizes = [8, 8], strides = [1, 1]} : vector<8x32xf32> to vector<8x8xf32>
    %65 = tpu.transpose %63, [1, 0] : vector<8x8xf32> -> vector<8x8xf32>
    %cst_31 = arith.constant dense<0.000000e+00> : vector<8x8xf32>
    %66 = tpu.matmul %62, %65, %cst_31 {dimension_numbers = #tpu.dot_dimension_numbers<[1], [0], [0], [1], [0, 0, 1, 1], [], []>} : vector<8x8xf32>, vector<8x8xf32>, vector<8x8xf32> -> vector<8x8xf32>
    %cst_32 = arith.constant 0.000000e+00 : f32
    %67 = vector.broadcast %cst_32 : f32 to vector<8x8xf32>
    %68 = arith.cmpf oeq, %5, %67 : vector<8x8xf32>
    %cst_33 = arith.constant -1.000000e+20 : f32
    %69 = vector.broadcast %cst_33 : f32 to vector<8x8xf32>
    %70 = arith.select %68, %69, %66 : vector<8x8xi1>, vector<8x8xf32>
    %cst_34 = arith.constant 0.176776692 : f32
    %71 = vector.broadcast %cst_34 : f32 to vector<8x8xf32>
    %72 = arith.mulf %70, %71 : vector<8x8xf32>
    %cst_35 = arith.constant dense<0xFF800000> : vector<8xf32>
    %73 = vector.multi_reduction <maximumf>, %72, %cst_35 [1] : vector<8x8xf32> to vector<8xf32>
    %74 = vector.shape_cast %73 : vector<8xf32> to vector<8x1xf32>
    %75 = vector.broadcast %74 : vector<8x1xf32> to vector<8x8xf32>
    %76 = arith.subf %72, %75 : vector<8x8xf32>
    %77 = math.exp %76 : vector<8x8xf32>
    %cst_36 = arith.constant dense<0.000000e+00> : vector<8xf32>
    %78 = vector.multi_reduction <add>, %77, %cst_36 [1] : vector<8x8xf32> to vector<8xf32>
    %79 = vector.shape_cast %78 : vector<8xf32> to vector<8x1xf32>
    %80 = tpu.reciprocal %79 {approx = true} : vector<8x1xf32> -> vector<8x1xf32>
    %81 = vector.broadcast %80 : vector<8x1xf32> to vector<8x8xf32>
    %82 = arith.mulf %77, %81 : vector<8x8xf32>
    %cst_37 = arith.constant dense<0.000000e+00> : vector<8x8xf32>
    %83 = tpu.matmul %82, %64, %cst_37 {dimension_numbers = #tpu.dot_dimension_numbers<[1], [0], [0], [1], [0, 0, 1, 1], [], []>} : vector<8x8xf32>, vector<8x8xf32>, vector<8x8xf32> -> vector<8x8xf32>
    %84 = vector.extract_strided_slice %10 {offsets = [0, 24], sizes = [8, 8], strides = [1, 1]} : vector<8x32xf32> to vector<8x8xf32>
    %85 = vector.extract_strided_slice %16 {offsets = [0, 24], sizes = [8, 8], strides = [1, 1]} : vector<8x32xf32> to vector<8x8xf32>
    %86 = vector.extract_strided_slice %17 {offsets = [0, 24], sizes = [8, 8], strides = [1, 1]} : vector<8x32xf32> to vector<8x8xf32>
    %87 = tpu.transpose %85, [1, 0] : vector<8x8xf32> -> vector<8x8xf32>
    %cst_38 = arith.constant dense<0.000000e+00> : vector<8x8xf32>
    %88 = tpu.matmul %84, %87, %cst_38 {dimension_numbers = #tpu.dot_dimension_numbers<[1], [0], [0], [1], [0, 0, 1, 1], [], []>} : vector<8x8xf32>, vector<8x8xf32>, vector<8x8xf32> -> vector<8x8xf32>
    %cst_39 = arith.constant 0.000000e+00 : f32
    %89 = vector.broadcast %cst_39 : f32 to vector<8x8xf32>
    %90 = arith.cmpf oeq, %5, %89 : vector<8x8xf32>
    %cst_40 = arith.constant -1.000000e+20 : f32
    %91 = vector.broadcast %cst_40 : f32 to vector<8x8xf32>
    %92 = arith.select %90, %91, %88 : vector<8x8xi1>, vector<8x8xf32>
    %cst_41 = arith.constant 0.176776692 : f32
    %93 = vector.broadcast %cst_41 : f32 to vector<8x8xf32>
    %94 = arith.mulf %92, %93 : vector<8x8xf32>
    %cst_42 = arith.constant dense<0xFF800000> : vector<8xf32>
    %95 = vector.multi_reduction <maximumf>, %94, %cst_42 [1] : vector<8x8xf32> to vector<8xf32>
    %96 = vector.shape_cast %95 : vector<8xf32> to vector<8x1xf32>
    %97 = vector.broadcast %96 : vector<8x1xf32> to vector<8x8xf32>
    %98 = arith.subf %94, %97 : vector<8x8xf32>
    %99 = math.exp %98 : vector<8x8xf32>
    %cst_43 = arith.constant dense<0.000000e+00> : vector<8xf32>
    %100 = vector.multi_reduction <add>, %99, %cst_43 [1] : vector<8x8xf32> to vector<8xf32>
    %101 = vector.shape_cast %100 : vector<8xf32> to vector<8x1xf32>
    %102 = tpu.reciprocal %101 {approx = true} : vector<8x1xf32> -> vector<8x1xf32>
    %103 = vector.broadcast %102 : vector<8x1xf32> to vector<8x8xf32>
    %104 = arith.mulf %99, %103 : vector<8x8xf32>
    %cst_44 = arith.constant dense<0.000000e+00> : vector<8x8xf32>
    %105 = tpu.matmul %104, %86, %cst_44 {dimension_numbers = #tpu.dot_dimension_numbers<[1], [0], [0], [1], [0, 0, 1, 1], [], []>} : vector<8x8xf32>, vector<8x8xf32>, vector<8x8xf32> -> vector<8x8xf32>
    %106 = tpu.concatenate %39, %61, %83, %105 in 1 : vector<8x8xf32>, vector<8x8xf32>, vector<8x8xf32>, vector<8x8xf32> -> vector<8x32xf32>
    %c0_45 = arith.constant 0 : index
    %c0_46 = arith.constant 0 : index
    %107 = vector.load %arg8[%c0_45, %c0_46] : memref<32x32xf32, #tpu.memory_space<vmem>>, vector<32x32xf32>
    %cst_47 = arith.constant dense<0.000000e+00> : vector<8x32xf32>
    %108 = tpu.matmul %106, %107, %cst_47 {dimension_numbers = #tpu.dot_dimension_numbers<[1], [0], [0], [1], [0, 0, 1, 1], [], []>} : vector<8x32xf32>, vector<32x32xf32>, vector<8x32xf32> -> vector<8x32xf32>
    %c0_48 = arith.constant 0 : index
    %c0_49 = arith.constant 0 : index
    %109 = vector.load %arg9[%c0_48, %c0_49] : memref<1x32xf32, #tpu.memory_space<vmem>>, vector<1x32xf32>
    %110 = vector.broadcast %109 : vector<1x32xf32> to vector<8x32xf32>
    %111 = arith.addf %108, %110 : vector<8x32xf32>
    %112 = arith.addf %111, %1 : vector<8x32xf32>
    %cst_50 = arith.constant dense<0.000000e+00> : vector<8xf32>
    %113 = vector.multi_reduction <add>, %112, %cst_50 [1] : vector<8x32xf32> to vector<8xf32>
    %114 = vector.shape_cast %113 : vector<8xf32> to vector<8x1xf32>
    %cst_51 = arith.constant 3.200000e+01 : f32
    %115 = vector.broadcast %cst_51 : f32 to vector<8x1xf32>
    %116 = arith.divf %114, %115 : vector<8x1xf32>
    %117 = vector.broadcast %116 : vector<8x1xf32> to vector<8x32xf32>
    %118 = arith.subf %112, %117 : vector<8x32xf32>
    %119 = vector.broadcast %116 : vector<8x1xf32> to vector<8x32xf32>
    %120 = arith.subf %112, %119 : vector<8x32xf32>
    %121 = arith.mulf %118, %120 : vector<8x32xf32>
    %cst_52 = arith.constant dense<0.000000e+00> : vector<8xf32>
    %122 = vector.multi_reduction <add>, %121, %cst_52 [1] : vector<8x32xf32> to vector<8xf32>
    %123 = vector.shape_cast %122 : vector<8xf32> to vector<8x1xf32>
    %cst_53 = arith.constant 3.200000e+01 : f32
    %124 = vector.broadcast %cst_53 : f32 to vector<8x1xf32>
    %125 = arith.divf %123, %124 : vector<8x1xf32>
    %126 = vector.broadcast %116 : vector<8x1xf32> to vector<8x32xf32>
    %127 = arith.subf %112, %126 : vector<8x32xf32>
    %cst_54 = arith.constant 9.99999974E-6 : f32
    %128 = vector.broadcast %cst_54 : f32 to vector<8x1xf32>
    %129 = arith.addf %125, %128 : vector<8x1xf32>
    %130 = math.rsqrt %129 : vector<8x1xf32>
    %131 = vector.broadcast %130 : vector<8x1xf32> to vector<8x32xf32>
    %132 = arith.mulf %127, %131 : vector<8x32xf32>
    %c0_55 = arith.constant 0 : index
    %c0_56 = arith.constant 0 : index
    %133 = vector.load %arg10[%c0_55, %c0_56] : memref<1x32xf32, #tpu.memory_space<vmem>>, vector<1x32xf32>
    %134 = vector.broadcast %133 : vector<1x32xf32> to vector<8x32xf32>
    %135 = arith.mulf %132, %134 : vector<8x32xf32>
    %c0_57 = arith.constant 0 : index
    %c0_58 = arith.constant 0 : index
    %136 = vector.load %arg11[%c0_57, %c0_58] : memref<1x32xf32, #tpu.memory_space<vmem>>, vector<1x32xf32>
    %137 = vector.broadcast %136 : vector<1x32xf32> to vector<8x32xf32>
    %138 = arith.addf %135, %137 : vector<8x32xf32>
    %c0_59 = arith.constant 0 : index
    %c0_60 = arith.constant 0 : index
    %c0_61 = arith.constant 0 : index
    %139 = vector.load %arg12[%c0_59, %c0_60, %c0_61] : memref<1x8x32xf32, #tpu.memory_space<vmem>>, vector<1x8x32xf32>
    %140 = vector.shape_cast %139 : vector<1x8x32xf32> to vector<8x32xf32>
    %141 = vector.shape_cast %138 : vector<8x32xf32> to vector<1x8x32xf32>
    tpu.vector_store %arg12[%c0_59, %c0_60, %c0_61], %141 {strides = array<i32>} : memref<1x8x32xf32, #tpu.memory_space<vmem>>, vector<1x8x32xf32>,
    return
  }
  func.func @transform_0(%arg0: i32) -> (i32, i32, i32) {
    %c0_i32 = arith.constant 0 : i32
    %c0_i32_0 = arith.constant 0 : i32
    %c0_i32_1 = arith.constant 0 : i32
    return %arg0, %c0_i32, %c0_i32_0 : i32, i32, i32
  }
  func.func @transform_1(%arg0: i32) -> (i32, i32, i32) {
    %c0_i32 = arith.constant 0 : i32
    %c0_i32_0 = arith.constant 0 : i32
    %c0_i32_1 = arith.constant 0 : i32
    return %arg0, %c0_i32, %c0_i32_0 : i32, i32, i32
  }
  func.func @transform_2(%arg0: i32) -> (i32, i32, i32) {
    %c0_i32 = arith.constant 0 : i32
    %c0_i32_0 = arith.constant 0 : i32
    %c0_i32_1 = arith.constant 0 : i32
    return %arg0, %c0_i32, %c0_i32_0 : i32, i32, i32
  }
  func.func @transform_3(%arg0: i32) -> (i32, i32) {
    %c0_i32 = arith.constant 0 : i32
    %c0_i32_0 = arith.constant 0 : i32
    %c0_i32_1 = arith.constant 0 : i32
    return %c0_i32, %c0_i32_0 : i32, i32
  }
  func.func @transform_4(%arg0: i32) -> (i32, i32) {
    %c0_i32 = arith.constant 0 : i32
    %c0_i32_0 = arith.constant 0 : i32
    %c0_i32_1 = arith.constant 0 : i32
    return %c0_i32, %c0_i32_0 : i32, i32
  }
  func.func @transform_5(%arg0: i32) -> (i32, i32) {
    %c0_i32 = arith.constant 0 : i32
    %c0_i32_0 = arith.constant 0 : i32
    %c0_i32_1 = arith.constant 0 : i32
    return %c0_i32, %c0_i32_0 : i32, i32
  }
  func.func @transform_6(%arg0: i32) -> (i32, i32) {
    %c0_i32 = arith.constant 0 : i32
    %c0_i32_0 = arith.constant 0 : i32
    %c0_i32_1 = arith.constant 0 : i32
    return %c0_i32, %c0_i32_0 : i32, i32
  }
  func.func @transform_7(%arg0: i32) -> (i32, i32) {
    %c0_i32 = arith.constant 0 : i32
    %c0_i32_0 = arith.constant 0 : i32
    %c0_i32_1 = arith.constant 0 : i32
    return %c0_i32, %c0_i32_0 : i32, i32
  }
  func.func @transform_8(%arg0: i32) -> (i32, i32) {
    %c0_i32 = arith.constant 0 : i32
    %c0_i32_0 = arith.constant 0 : i32
    %c0_i32_1 = arith.constant 0 : i32
    return %c0_i32, %c0_i32_0 : i32, i32
  }
  func.func @transform_9(%arg0: i32) -> (i32, i32) {
    %c0_i32 = arith.constant 0 : i32
    %c0_i32_0 = arith.constant 0 : i32
    %c0_i32_1 = arith.constant 0 : i32
    return %c0_i32, %c0_i32_0 : i32, i32
  }
  func.func @transform_10(%arg0: i32) -> (i32, i32) {
    %c0_i32 = arith.constant 0 : i32
    %c0_i32_0 = arith.constant 0 : i32
    %c0_i32_1 = arith.constant 0 : i32
    return %c0_i32, %c0_i32_0 : i32, i32
  }
  func.func @transform_11(%arg0: i32) -> (i32, i32, i32) {
    %c0_i32 = arith.constant 0 : i32
    %c0_i32_0 = arith.constant 0 : i32
    %c0_i32_1 = arith.constant 0 : i32
    return %arg0, %c0_i32, %c0_i32_0 : i32, i32, i32
  }
}

module attributes {stable_mosaic.version = 11 : i64} {
  func.func @_ffn_ln_kernel(%arg0: i32, %arg1: memref<16x32xf32, #tpu.memory_space<vmem>>, %arg2: memref<32x128xf32, #tpu.memory_space<vmem>>, %arg3: memref<1x128xf32, #tpu.memory_space<vmem>>, %arg4: memref<128x32xf32, #tpu.memory_space<vmem>>, %arg5: memref<1x32xf32, #tpu.memory_space<vmem>>, %arg6: memref<1x32xf32, #tpu.memory_space<vmem>>, %arg7: memref<1x32xf32, #tpu.memory_space<vmem>>, %arg8: memref<16x32xf32, #tpu.memory_space<vmem>>) attributes {dimension_semantics = [#tpu.dimension_semantics<arbitrary>], iteration_bounds = array<i64: 1>, scalar_prefetch = 0 : i64, scratch_operands = 0 : i64, tpu.core_type = #tpu.core_type<tc>, window_params = [{pipeline_mode = #tpu.pipeline_mode<synchronous>, transform_indices = @transform_0, window_bounds = array<i64: 16, 32>}, {pipeline_mode = #tpu.pipeline_mode<synchronous>, transform_indices = @transform_1, window_bounds = array<i64: 32, 128>}, {pipeline_mode = #tpu.pipeline_mode<synchronous>, transform_indices = @transform_2, window_bounds = array<i64: 1, 128>}, {pipeline_mode = #tpu.pipeline_mode<synchronous>, transform_indices = @transform_3, window_bounds = array<i64: 128, 32>}, {pipeline_mode = #tpu.pipeline_mode<synchronous>, transform_indices = @transform_4, window_bounds = array<i64: 1, 32>}, {pipeline_mode = #tpu.pipeline_mode<synchronous>, transform_indices = @transform_5, window_bounds = array<i64: 1, 32>}, {pipeline_mode = #tpu.pipeline_mode<synchronous>, transform_indices = @transform_6, window_bounds = array<i64: 1, 32>}, {pipeline_mode = #tpu.pipeline_mode<synchronous>, transform_indices = @transform_7, window_bounds = array<i64: 16, 32>}]} {
    %c0 = arith.constant 0 : index
    %c0_0 = arith.constant 0 : index
    %0 = vector.load %arg1[%c0, %c0_0] : memref<16x32xf32, #tpu.memory_space<vmem>>, vector<16x32xf32>
    %c0_1 = arith.constant 0 : index
    %c0_2 = arith.constant 0 : index
    %1 = vector.load %arg2[%c0_1, %c0_2] : memref<32x128xf32, #tpu.memory_space<vmem>>, vector<32x128xf32>
    %cst = arith.constant dense<0.000000e+00> : vector<16x128xf32>
    %2 = tpu.matmul %0, %1, %cst {dimension_numbers = #tpu.dot_dimension_numbers<[1], [0], [0], [1], [0, 0, 1, 1], [], []>} : vector<16x32xf32>, vector<32x128xf32>, vector<16x128xf32> -> vector<16x128xf32>
    %c0_3 = arith.constant 0 : index
    %c0_4 = arith.constant 0 : index
    %3 = vector.load %arg3[%c0_3, %c0_4] : memref<1x128xf32, #tpu.memory_space<vmem>>, vector<1x128xf32>
    %4 = vector.broadcast %3 : vector<1x128xf32> to vector<16x128xf32>
    %5 = arith.addf %2, %4 : vector<16x128xf32>
    %cst_5 = arith.constant 0.000000e+00 : f32
    %6 = vector.broadcast %cst_5 : f32 to vector<16x128xf32>
    %7 = arith.maximumf %5, %6 : vector<16x128xf32>
    %c0_6 = arith.constant 0 : index
    %c0_7 = arith.constant 0 : index
    %8 = vector.load %arg4[%c0_6, %c0_7] : memref<128x32xf32, #tpu.memory_space<vmem>>, vector<128x32xf32>
    %cst_8 = arith.constant dense<0.000000e+00> : vector<16x32xf32>
    %9 = tpu.matmul %7, %8, %cst_8 {dimension_numbers = #tpu.dot_dimension_numbers<[1], [0], [0], [1], [0, 0, 1, 1], [], []>} : vector<16x128xf32>, vector<128x32xf32>, vector<16x32xf32> -> vector<16x32xf32>
    %c0_9 = arith.constant 0 : index
    %c0_10 = arith.constant 0 : index
    %10 = vector.load %arg5[%c0_9, %c0_10] : memref<1x32xf32, #tpu.memory_space<vmem>>, vector<1x32xf32>
    %11 = vector.broadcast %10 : vector<1x32xf32> to vector<16x32xf32>
    %12 = arith.addf %9, %11 : vector<16x32xf32>
    %13 = arith.addf %12, %0 : vector<16x32xf32>
    %cst_11 = arith.constant dense<0.000000e+00> : vector<16xf32>
    %14 = vector.multi_reduction <add>, %13, %cst_11 [1] : vector<16x32xf32> to vector<16xf32>
    %15 = vector.shape_cast %14 : vector<16xf32> to vector<16x1xf32>
    %cst_12 = arith.constant 3.200000e+01 : f32
    %16 = vector.broadcast %cst_12 : f32 to vector<16x1xf32>
    %17 = arith.divf %15, %16 : vector<16x1xf32>
    %18 = vector.broadcast %17 : vector<16x1xf32> to vector<16x32xf32>
    %19 = arith.subf %13, %18 : vector<16x32xf32>
    %20 = vector.broadcast %17 : vector<16x1xf32> to vector<16x32xf32>
    %21 = arith.subf %13, %20 : vector<16x32xf32>
    %22 = arith.mulf %19, %21 : vector<16x32xf32>
    %cst_13 = arith.constant dense<0.000000e+00> : vector<16xf32>
    %23 = vector.multi_reduction <add>, %22, %cst_13 [1] : vector<16x32xf32> to vector<16xf32>
    %24 = vector.shape_cast %23 : vector<16xf32> to vector<16x1xf32>
    %cst_14 = arith.constant 3.200000e+01 : f32
    %25 = vector.broadcast %cst_14 : f32 to vector<16x1xf32>
    %26 = arith.divf %24, %25 : vector<16x1xf32>
    %27 = vector.broadcast %17 : vector<16x1xf32> to vector<16x32xf32>
    %28 = arith.subf %13, %27 : vector<16x32xf32>
    %cst_15 = arith.constant 9.99999974E-6 : f32
    %29 = vector.broadcast %cst_15 : f32 to vector<16x1xf32>
    %30 = arith.addf %26, %29 : vector<16x1xf32>
    %31 = math.rsqrt %30 : vector<16x1xf32>
    %32 = vector.broadcast %31 : vector<16x1xf32> to vector<16x32xf32>
    %33 = arith.mulf %28, %32 : vector<16x32xf32>
    %c0_16 = arith.constant 0 : index
    %c0_17 = arith.constant 0 : index
    %34 = vector.load %arg6[%c0_16, %c0_17] : memref<1x32xf32, #tpu.memory_space<vmem>>, vector<1x32xf32>
    %35 = vector.broadcast %34 : vector<1x32xf32> to vector<16x32xf32>
    %36 = arith.mulf %33, %35 : vector<16x32xf32>
    %c0_18 = arith.constant 0 : index
    %c0_19 = arith.constant 0 : index
    %37 = vector.load %arg7[%c0_18, %c0_19] : memref<1x32xf32, #tpu.memory_space<vmem>>, vector<1x32xf32>
    %38 = vector.broadcast %37 : vector<1x32xf32> to vector<16x32xf32>
    %39 = arith.addf %36, %38 : vector<16x32xf32>
    %c0_20 = arith.constant 0 : index
    %c0_21 = arith.constant 0 : index
    %40 = vector.load %arg8[%c0_20, %c0_21] : memref<16x32xf32, #tpu.memory_space<vmem>>, vector<16x32xf32>
    tpu.vector_store %arg8[%c0_20, %c0_21], %39 {strides = array<i32>} : memref<16x32xf32, #tpu.memory_space<vmem>>, vector<16x32xf32>,
    return
  }
  func.func @transform_0(%arg0: i32) -> (i32, i32) {
    %c0_i32 = arith.constant 0 : i32
    %c0_i32_0 = arith.constant 0 : i32
    %c0_i32_1 = arith.constant 0 : i32
    return %c0_i32, %c0_i32_0 : i32, i32
  }
  func.func @transform_1(%arg0: i32) -> (i32, i32) {
    %c0_i32 = arith.constant 0 : i32
    %c0_i32_0 = arith.constant 0 : i32
    %c0_i32_1 = arith.constant 0 : i32
    return %c0_i32, %c0_i32_0 : i32, i32
  }
  func.func @transform_2(%arg0: i32) -> (i32, i32) {
    %c0_i32 = arith.constant 0 : i32
    %c0_i32_0 = arith.constant 0 : i32
    %c0_i32_1 = arith.constant 0 : i32
    return %c0_i32, %c0_i32_0 : i32, i32
  }
  func.func @transform_3(%arg0: i32) -> (i32, i32) {
    %c0_i32 = arith.constant 0 : i32
    %c0_i32_0 = arith.constant 0 : i32
    %c0_i32_1 = arith.constant 0 : i32
    return %c0_i32, %c0_i32_0 : i32, i32
  }
  func.func @transform_4(%arg0: i32) -> (i32, i32) {
    %c0_i32 = arith.constant 0 : i32
    %c0_i32_0 = arith.constant 0 : i32
    %c0_i32_1 = arith.constant 0 : i32
    return %c0_i32, %c0_i32_0 : i32, i32
  }
  func.func @transform_5(%arg0: i32) -> (i32, i32) {
    %c0_i32 = arith.constant 0 : i32
    %c0_i32_0 = arith.constant 0 : i32
    %c0_i32_1 = arith.constant 0 : i32
    return %c0_i32, %c0_i32_0 : i32, i32
  }
  func.func @transform_6(%arg0: i32) -> (i32, i32) {
    %c0_i32 = arith.constant 0 : i32
    %c0_i32_0 = arith.constant 0 : i32
    %c0_i32_1 = arith.constant 0 : i32
    return %c0_i32, %c0_i32_0 : i32, i32
  }
  func.func @transform_7(%arg0: i32) -> (i32, i32) {
    %c0_i32 = arith.constant 0 : i32
    %c0_i32_0 = arith.constant 0 : i32
    %c0_i32_1 = arith.constant 0 : i32
    return %c0_i32, %c0_i32_0 : i32, i32
  }
}

module attributes {stable_mosaic.version = 11 : i64} {
  func.func @_proj_kernel(%arg0: i32, %arg1: memref<16x32xf32, #tpu.memory_space<vmem>>, %arg2: memref<32x128xf32, #tpu.memory_space<vmem>>, %arg3: memref<1x128xf32, #tpu.memory_space<vmem>>, %arg4: memref<16x128xf32, #tpu.memory_space<vmem>>) attributes {dimension_semantics = [#tpu.dimension_semantics<arbitrary>], iteration_bounds = array<i64: 1>, scalar_prefetch = 0 : i64, scratch_operands = 0 : i64, tpu.core_type = #tpu.core_type<tc>, window_params = [{pipeline_mode = #tpu.pipeline_mode<synchronous>, transform_indices = @transform_0, window_bounds = array<i64: 16, 32>}, {pipeline_mode = #tpu.pipeline_mode<synchronous>, transform_indices = @transform_1, window_bounds = array<i64: 32, 128>}, {pipeline_mode = #tpu.pipeline_mode<synchronous>, transform_indices = @transform_2, window_bounds = array<i64: 1, 128>}, {pipeline_mode = #tpu.pipeline_mode<synchronous>, transform_indices = @transform_3, window_bounds = array<i64: 16, 128>}]} {
    %c0 = arith.constant 0 : index
    %c0_0 = arith.constant 0 : index
    %0 = vector.load %arg1[%c0, %c0_0] : memref<16x32xf32, #tpu.memory_space<vmem>>, vector<16x32xf32>
    %c0_1 = arith.constant 0 : index
    %c0_2 = arith.constant 0 : index
    %1 = vector.load %arg2[%c0_1, %c0_2] : memref<32x128xf32, #tpu.memory_space<vmem>>, vector<32x128xf32>
    %cst = arith.constant dense<0.000000e+00> : vector<16x128xf32>
    %2 = tpu.matmul %0, %1, %cst {dimension_numbers = #tpu.dot_dimension_numbers<[1], [0], [0], [1], [0, 0, 1, 1], [], []>} : vector<16x32xf32>, vector<32x128xf32>, vector<16x128xf32> -> vector<16x128xf32>
    %c0_3 = arith.constant 0 : index
    %c0_4 = arith.constant 0 : index
    %3 = vector.load %arg3[%c0_3, %c0_4] : memref<1x128xf32, #tpu.memory_space<vmem>>, vector<1x128xf32>
    %4 = vector.broadcast %3 : vector<1x128xf32> to vector<16x128xf32>
    %5 = arith.addf %2, %4 : vector<16x128xf32>
    %c0_5 = arith.constant 0 : index
    %c0_6 = arith.constant 0 : index
    %6 = vector.load %arg4[%c0_5, %c0_6] : memref<16x128xf32, #tpu.memory_space<vmem>>, vector<16x128xf32>
    tpu.vector_store %arg4[%c0_5, %c0_6], %5 {strides = array<i32>} : memref<16x128xf32, #tpu.memory_space<vmem>>, vector<16x128xf32>,
    return
  }
  func.func @transform_0(%arg0: i32) -> (i32, i32) {
    %c0_i32 = arith.constant 0 : i32
    %c0_i32_0 = arith.constant 0 : i32
    %c0_i32_1 = arith.constant 0 : i32
    return %c0_i32, %c0_i32_0 : i32, i32
  }
  func.func @transform_1(%arg0: i32) -> (i32, i32) {
    %c0_i32 = arith.constant 0 : i32
    %c0_i32_0 = arith.constant 0 : i32
    %c0_i32_1 = arith.constant 0 : i32
    return %c0_i32, %c0_i32_0 : i32, i32
  }
  func.func @transform_2(%arg0: i32) -> (i32, i32) {
    %c0_i32 = arith.constant 0 : i32
    %c0_i32_0 = arith.constant 0 : i32
    %c0_i32_1 = arith.constant 0 : i32
    return %c0_i32, %c0_i32_0 : i32, i32
  }
  func.func @transform_3(%arg0: i32) -> (i32, i32) {
    %c0_i32 = arith.constant 0 : i32
    %c0_i32_0 = arith.constant 0 : i32
    %c0_i32_1 = arith.constant 0 : i32
    return %c0_i32, %c0_i32_0 : i32, i32
  }
}

</mosaic_0001>

<llo_original>
// kernel: decoder_forward.13
$region0: #{decoder_forward.13}
  #allocation0 [shape = 'u32[]', space=smem, size = 0x4, offset = 0x4, fixed_abs, tag = 'smem constant byte address 0x4 - core index']
  #allocation1 [shape = 'u32[144,128]{1,0:T(1,128)}', space=vmem, size = 0x12000, scoped, tag = 'internal scratch']
  %s0 = inlined_call_operand.vmem [shape: f32[16,32], index: 0, kind: input, shape index: {}]
  %s1 = inlined_call_operand.vmem [shape: f32[32,128], index: 1, kind: input, shape index: {}]
  %s2 = inlined_call_operand.vmem [shape: f32[1,128], index: 2, kind: input, shape index: {}]
  %s3 = inlined_call_operand.vmem [shape: f32[16,128], index: 3, kind: output, shape index: {}]
  %s4 = sld [smem:[#allocation0]]
  $region22: #{decoder_forward.13} parent=0
    _
  %s6 = ssub.s32 1, %s4
  %s7 = scalar_select 0, %s6, %s4
  // Predicated region
  $region2: #{decoder_forward.13} parent=0 // pred_check
    _
  $region3: #{decoder_forward.13} parent=0 // pred_check_branch
    %9 = sbr.rel (0) target = $region5
  $region4: #{decoder_forward.13} parent=0 // pred_region
    _
  $region5: #{decoder_forward.13} parent=0 // pred_fallthru
    _
  // Predicated region
  $region6: #{decoder_forward.13} parent=0 // pred_check
    _
  $region7: #{decoder_forward.13} parent=0 // pred_check_branch
    %11 = sbr.rel (0) target = $region9
  $region8: #{decoder_forward.13} parent=0 // pred_region
    _
  $region9: #{decoder_forward.13} parent=0 // pred_fallthru
    _
  // Predicated region
  $region10: #{decoder_forward.13} parent=0 // pred_check
    _
  $region11: #{decoder_forward.13} parent=0 // pred_check_branch
    %13 = sbr.rel (0) target = $region13
  $region12: #{decoder_forward.13} parent=0 // pred_region
    _
  $region13: #{decoder_forward.13} parent=0 // pred_fallthru
    _
  %v14 = vld [vmem:[%s0] sm:$0xff]
  %v15 = vld [vmem:[%s0 + $0x8] sm:$0xff]
  %v16 = vld [vmem:[%s1] sm:$0xff]
  %v17 = vld [vmem:[%s1 + $0x8] sm:$0xff]
  %v18 = vld [vmem:[%s1 + $0x10] sm:$0xff]
  %v19 = vld [vmem:[%s1 + $0x18] sm:$0xff]
  %v20 = vld [vmem:[%s2] sm:$0x1]
  %v22 = vlaneseq
  %v23 = vshrl.u32 %v22, 7
  %v24 = vsub.s32 0, %v23
  %v25 = vrot.slane %v20, %v24
  %vm27 = vcmask 261120
  %v29 = vsel %vm27, %v14, 0
  %v32 = vsel %vm27, %v15, 0
  %34 = vmatprep.subr.mxu0 0.0
  %35 = vmatpush1.msra.mxu0 0.0
  %36 = vmatprep.subr.mxu0 0.0
  %37 = vmatpush1.msra.mxu0 0.0
  %38 = vmatprep.subr.mxu0 0.0
  %39 = vmatpush1.msra.mxu0 0.0
  %40 = vmatprep.subr.mxu0 0.0
  %41 = vmatpush1.msra.mxu0 0.0
  %42 = vmatprep.subr.mxu0 0.0
  %43 = vmatpush1.msra.mxu0 0.0
  %44 = vmatprep.subr.mxu0 0.0
  %45 = vmatpush1.msra.mxu0 0.0
  %46 = vmatprep.subr.mxu0 0.0
  %47 = vmatpush1.msra.mxu0 0.0
  %48 = vmatprep.subr.mxu0 0.0
  %49 = vmatpush1.msra.mxu0 0.0
  %50 = vmatprep.subr.mxu0 0.0
  %51 = vmatpush1.msra.mxu0 0.0
  %52 = vmatprep.subr.mxu0 0.0
  %53 = vmatpush1.msra.mxu0 0.0
  %54 = vmatprep.subr.mxu0 0.0
  %55 = vmatpush1.msra.mxu0 0.0
  %56 = vmatprep.subr.mxu0 0.0
  %57 = vmatpush1.msra.mxu0 0.0
  %58 = vmatprep.subr.mxu0 0.0
  %59 = vmatpush1.msra.mxu0 %v19
  %60 = vmatprep.subr.mxu0 0.0
  %61 = vmatpush1.msra.mxu0 %v18
  %62 = vmatprep.subr.mxu0 0.0
  %63 = vmatpush1.msra.mxu0 %v17
  %64 = vmatprep.subr.mxu0 0.0
  %65 = vmatpush1.msra.mxu0 %v16
  %66 = vmatprep.subr.mxu0 0.0
  %67 = vmatpush2.msra.mxu0 0.0
  %68 = vmatprep.subr.mxu0 0.0
  %69 = vmatpush2.msra.mxu0 0.0
  %70 = vmatprep.subr.mxu0 0.0
  %71 = vmatpush2.msra.mxu0 0.0
  %72 = vmatprep.subr.mxu0 0.0
  %73 = vmatpush2.msra.mxu0 0.0
  %74 = vmatprep.subr.mxu0 0.0
  %75 = vmatpush2.msra.mxu0 0.0
  %76 = vmatprep.subr.mxu0 0.0
  %77 = vmatpush2.msra.mxu0 0.0
  %78 = vmatprep.subr.mxu0 0.0
  %79 = vmatpush2.msra.mxu0 0.0
  %80 = vmatprep.subr.mxu0 0.0
  %81 = vmatpush2.msra.mxu0 0.0
  %82 = vmatprep.subr.mxu0 0.0
  %83 = vmatpush2.msra.mxu0 0.0
  %84 = vmatprep.subr.mxu0 0.0
  %85 = vmatpush2.msra.mxu0 0.0
  %86 = vmatprep.subr.mxu0 0.0
  %87 = vmatpush2.msra.mxu0 0.0
  %88 = vmatprep.subr.mxu0 0.0
  %89 = vmatpush2.msra.mxu0 0.0
  %90 = vmatprep.subr.mxu0 0.0
  %91 = vmatpush2.msra.mxu0 0.0
  %92 = vmatprep.subr.mxu0 0.0
  %93 = vmatpush2.msra.mxu0 0.0
  %94 = vmatprep.subr.mxu0 0.0
  %95 = vmatpush2.msra.mxu0 0.0
  %96 = vmatprep.subr.mxu0 0.0
  %97 = vmatpush2.msra.mxu0 0.0
  %98 = vmatprep.mubr.f32.mxu0 0.0
  %99 = vmatmul.mubr.f32.gmra.mxu0 %v29
  %v100 = vpop.f32.mrf.mxu0
  %v101 = vadd.f32 %v25, %v100
  %v102 = vpop.f32.mrf.mxu0
  %103 = vmatprep.mubr.f32.mxu0 0.0
  %104 = vmatmul.mubr.f32.gmra.mxu0 %v32
  %v105 = vpop.f32.mrf.mxu0
  %v106 = vadd.f32 %v25, %v105
  %v107 = vpop.f32.mrf.mxu0
  %108 = vdwg.mxu0
  %109 = vst [vmem:[%s3] sm:$0xff] %v101
  %110 = vst [vmem:[%s3 + $0x8] sm:$0xff] %v106
  // Predicated region
  $region14: #{decoder_forward.13} parent=0 // pred_check
    _
  $region15: #{decoder_forward.13} parent=0 // pred_check_branch
    %112 = sbr.rel (0) target = $region17
  $region16: #{decoder_forward.13} parent=0 // pred_region
    _
  $region17: #{decoder_forward.13} parent=0 // pred_fallthru
    _
  // Predicated region
  $region18: #{decoder_forward.13} parent=0 // pred_check
    _
  $region19: #{decoder_forward.13} parent=0 // pred_check_branch
    %114 = sbr.rel (0) target = $region21
  $region20: #{decoder_forward.13} parent=0 // pred_region
    _
  $region21: #{decoder_forward.13} parent=0 // pred_fallthru
    _

// kernel: decoder_forward.9
$region0: #{decoder_forward.9}
  #allocation0 [shape = 'u32[]', space=smem, size = 0x4, offset = 0x4, fixed_abs, tag = 'smem constant byte address 0x4 - core index']
  #allocation1 [shape = 'u32[144,128]{1,0:T(1,128)}', space=vmem, size = 0x12000, scoped, tag = 'internal scratch']
  %s0 = inlined_call_operand.vmem [shape: f32[16,32], index: 0, kind: input, shape index: {}]
  %s1 = inlined_call_operand.vmem [shape: f32[32,128], index: 1, kind: input, shape index: {}]
  %s2 = inlined_call_operand.vmem [shape: f32[1,128], index: 2, kind: input, shape index: {}]
  %s3 = inlined_call_operand.vmem [shape: f32[128,32], index: 3, kind: input, shape index: {}]
  %s4 = inlined_call_operand.vmem [shape: f32[1,32], index: 4, kind: input, shape index: {}]
  %s5 = inlined_call_operand.vmem [shape: f32[1,32], index: 5, kind: input, shape index: {}]
  %s6 = inlined_call_operand.vmem [shape: f32[1,32], index: 6, kind: input, shape index: {}]
  %s7 = inlined_call_operand.vmem [shape: f32[16,32], index: 7, kind: output, shape index: {}]
  %s8 = sld [smem:[#allocation0]]
  $region38: #{decoder_forward.9} parent=0
    _
  %s10 = ssub.s32 1, %s8
  %s11 = scalar_select 0, %s10, %s8
  // Predicated region
  $region2: #{decoder_forward.9} parent=0 // pred_check
    _
  $region3: #{decoder_forward.9} parent=0 // pred_check_branch
    %13 = sbr.rel (0) target = $region5
  $region4: #{decoder_forward.9} parent=0 // pred_region
    _
  $region5: #{decoder_forward.9} parent=0 // pred_fallthru
    _
  // Predicated region
  $region6: #{decoder_forward.9} parent=0 // pred_check
    _
  $region7: #{decoder_forward.9} parent=0 // pred_check_branch
    %15 = sbr.rel (0) target = $region9
  $region8: #{decoder_forward.9} parent=0 // pred_region
    _
  $region9: #{decoder_forward.9} parent=0 // pred_fallthru
    _
  // Predicated region
  $region10: #{decoder_forward.9} parent=0 // pred_check
    _
  $region11: #{decoder_forward.9} parent=0 // pred_check_branch
    %17 = sbr.rel (0) target = $region13
  $region12: #{decoder_forward.9} parent=0 // pred_region
    _
  $region13: #{decoder_forward.9} parent=0 // pred_fallthru
    _
  // Predicated region
  $region14: #{decoder_forward.9} parent=0 // pred_check
    _
  $region15: #{decoder_forward.9} parent=0 // pred_check_branch
    %19 = sbr.rel (0) target = $region17
  $region16: #{decoder_forward.9} parent=0 // pred_region
    _
  $region17: #{decoder_forward.9} parent=0 // pred_fallthru
    _
  // Predicated region
  $region18: #{decoder_forward.9} parent=0 // pred_check
    _
  $region19: #{decoder_forward.9} parent=0 // pred_check_branch
    %21 = sbr.rel (0) target = $region21
  $region20: #{decoder_forward.9} parent=0 // pred_region
    _
  $region21: #{decoder_forward.9} parent=0 // pred_fallthru
    _
  // Predicated region
  $region22: #{decoder_forward.9} parent=0 // pred_check
    _
  $region23: #{decoder_forward.9} parent=0 // pred_check_branch
    %23 = sbr.rel (0) target = $region25
  $region24: #{decoder_forward.9} parent=0 // pred_region
    _
  $region25: #{decoder_forward.9} parent=0 // pred_fallthru
    _
  // Predicated region
  $region26: #{decoder_forward.9} parent=0 // pred_check
    _
  $region27: #{decoder_forward.9} parent=0 // pred_check_branch
    %25 = sbr.rel (0) target = $region29
  $region28: #{decoder_forward.9} parent=0 // pred_region
    _
  $region29: #{decoder_forward.9} parent=0 // pred_fallthru
    _
  %v26 = vld [vmem:[%s0] sm:$0xff]
  %v27 = vld [vmem:[%s0 + $0x8] sm:$0xff]
  %v28 = vld [vmem:[%s1] sm:$0xff]
  %v29 = vld [vmem:[%s1 + $0x8] sm:$0xff]
  %v30 = vld [vmem:[%s1 + $0x10] sm:$0xff]
  %v31 = vld [vmem:[%s1 + $0x18] sm:$0xff]
  %v32 = vld [vmem:[%s2] sm:$0x1]
  %v34 = vlaneseq
  %v35 = vshrl.u32 %v34, 7
  %v36 = vsub.s32 0, %v35
  %v37 = vrot.slane %v32, %v36
  %vm39 = vcmask 261120
  %v41 = vsel %vm39, %v26, 0
  %v44 = vsel %vm39, %v27, 0
  %46 = vmatprep.subr.mxu0 0.0
  %47 = vmatpush1.msra.mxu0 0.0
  %48 = vmatprep.subr.mxu0 0.0
  %49 = vmatpush1.msra.mxu0 0.0
  %50 = vmatprep.subr.mxu0 0.0
  %51 = vmatpush1.msra.mxu0 0.0
  %52 = vmatprep.subr.mxu0 0.0
  %53 = vmatpush1.msra.mxu0 0.0
  %54 = vmatprep.subr.mxu0 0.0
  %55 = vmatpush1.msra.mxu0 0.0
  %56 = vmatprep.subr.mxu0 0.0
  %57 = vmatpush1.msra.mxu0 0.0
  %58 = vmatprep.subr.mxu0 0.0
  %59 = vmatpush1.msra.mxu0 0.0
  %60 = vmatprep.subr.mxu0 0.0
  %61 = vmatpush1.msra.mxu0 0.0
  %62 = vmatprep.subr.mxu0 0.0
  %63 = vmatpush1.msra.mxu0 0.0
  %64 = vmatprep.subr.mxu0 0.0
  %65 = vmatpush1.msra.mxu0 0.0
  %66 = vmatprep.subr.mxu0 0.0
  %67 = vmatpush1.msra.mxu0 0.0
  %68 = vmatprep.subr.mxu0 0.0
  %69 = vmatpush1.msra.mxu0 0.0
  %70 = vmatprep.subr.mxu0 0.0
  %71 = vmatpush1.msra.mxu0 %v31
  %72 = vmatprep.subr.mxu0 0.0
  %73 = vmatpush1.msra.mxu0 %v30
  %74 = vmatprep.subr.mxu0 0.0
  %75 = vmatpush1.msra.mxu0 %v29
  %76 = vmatprep.subr.mxu0 0.0
  %77 = vmatpush1.msra.mxu0 %v28
  %78 = vmatprep.subr.mxu0 0.0
  %79 = vmatpush2.msra.mxu0 0.0
  %80 = vmatprep.subr.mxu0 0.0
  %81 = vmatpush2.msra.mxu0 0.0
  %82 = vmatprep.subr.mxu0 0.0
  %83 = vmatpush2.msra.mxu0 0.0
  %84 = vmatprep.subr.mxu0 0.0
  %85 = vmatpush2.msra.mxu0 0.0
  %86 = vmatprep.subr.mxu0 0.0
  %87 = vmatpush2.msra.mxu0 0.0
  %88 = vmatprep.subr.mxu0 0.0
  %89 = vmatpush2.msra.mxu0 0.0
  %90 = vmatprep.subr.mxu0 0.0
  %91 = vmatpush2.msra.mxu0 0.0
  %92 = vmatprep.subr.mxu0 0.0
  %93 = vmatpush2.msra.mxu0 0.0
  %94 = vmatprep.subr.mxu0 0.0
  %95 = vmatpush2.msra.mxu0 0.0
  %96 = vmatprep.subr.mxu0 0.0
  %97 = vmatpush2.msra.mxu0 0.0
  %98 = vmatprep.subr.mxu0 0.0
  %99 = vmatpush2.msra.mxu0 0.0
  %100 = vmatprep.subr.mxu0 0.0
  %101 = vmatpush2.msra.mxu0 0.0
  %102 = vmatprep.subr.mxu0 0.0
  %103 = vmatpush2.msra.mxu0 0.0
  %104 = vmatprep.subr.mxu0 0.0
  %105 = vmatpush2.msra.mxu0 0.0
  %106 = vmatprep.subr.mxu0 0.0
  %107 = vmatpush2.msra.mxu0 0.0
  %108 = vmatprep.subr.mxu0 0.0
  %109 = vmatpush2.msra.mxu0 0.0
  %110 = vmatprep.mubr.f32.mxu0 0.0
  %111 = vmatmul.mubr.f32.gmra.mxu0 %v41
  %v112 = vpop.f32.mrf.mxu0
  %v113 = vadd.f32 %v37, %v112
  %v114 = vpop.f32.mrf.mxu0
  %115 = vmatprep.mubr.f32.mxu0 0.0
  %116 = vmatmul.mubr.f32.gmra.mxu0 %v44
  %v117 = vpop.f32.mrf.mxu0
  %v118 = vadd.f32 %v37, %v117
  %v119 = vpop.f32.mrf.mxu0
  %120 = vdwg.mxu0
  %v121 = vmax.f32 %v113, 0.0
  %v122 = vmax.f32 %v118, 0.0
  %v123 = vld [vmem:[%s3] sm:$0xff]
  %v124 = vld [vmem:[%s3 + $0x8] sm:$0xff]
  %v125 = vld [vmem:[%s3 + $0x10] sm:$0xff]
  %v126 = vld [vmem:[%s3 + $0x18] sm:$0xff]
  %v127 = vld [vmem:[%s3 + $0x20] sm:$0xff]
  %v128 = vld [vmem:[%s3 + $0x28] sm:$0xff]
  %v129 = vld [vmem:[%s3 + $0x30] sm:$0xff]
  %v130 = vld [vmem:[%s3 + $0x38] sm:$0xff]
  %v131 = vld [vmem:[%s3 + $0x40] sm:$0xff]
  %v132 = vld [vmem:[%s3 + $0x48] sm:$0xff]
  %v133 = vld [vmem:[%s3 + $0x50] sm:$0xff]
  %v134 = vld [vmem:[%s3 + $0x58] sm:$0xff]
  %v135 = vld [vmem:[%s3 + $0x60] sm:$0xff]
  %v136 = vld [vmem:[%s3 + $0x68] sm:$0xff]
  %v137 = vld [vmem:[%s3 + $0x70] sm:$0xff]
  %v138 = vld [vmem:[%s3 + $0x78] sm:$0xff]
  %v139 = vld [vmem:[%s4] sm:$0x1]
  %v141 = vlaneseq
  %v142 = vshrl.u32 %v141, 7
  %v143 = vsub.s32 0, %v142
  %v144 = vrot.slane %v139, %v143
  %146 = vmatprep.subr.mxu0 0.0
  %147 = vmatpush1.msra.mxu0 %v138
  %148 = vmatprep.subr.mxu0 0.0
  %149 = vmatpush1.msra.mxu0 %v137
  %150 = vmatprep.subr.mxu0 0.0
  %151 = vmatpush1.msra.mxu0 %v136
  %152 = vmatprep.subr.mxu0 0.0
  %153 = vmatpush1.msra.mxu0 %v135
  %154 = vmatprep.subr.mxu0 0.0
  %155 = vmatpush1.msra.mxu0 %v134
  %156 = vmatprep.subr.mxu0 0.0
  %157 = vmatpush1.msra.mxu0 %v133
  %158 = vmatprep.subr.mxu0 0.0
  %159 = vmatpush1.msra.mxu0 %v132
  %160 = vmatprep.subr.mxu0 0.0
  %161 = vmatpush1.msra.mxu0 %v131
  %162 = vmatprep.subr.mxu0 0.0
  %163 = vmatpush1.msra.mxu0 %v130
  %164 = vmatprep.subr.mxu0 0.0
  %165 = vmatpush1.msra.mxu0 %v129
  %166 = vmatprep.subr.mxu0 0.0
  %167 = vmatpush1.msra.mxu0 %v128
  %168 = vmatprep.subr.mxu0 0.0
  %169 = vmatpush1.msra.mxu0 %v127
  %170 = vmatprep.subr.mxu0 0.0
  %171 = vmatpush1.msra.mxu0 %v126
  %172 = vmatprep.subr.mxu0 0.0
  %173 = vmatpush1.msra.mxu0 %v125
  %174 = vmatprep.subr.mxu0 0.0
  %175 = vmatpush1.msra.mxu0 %v124
  %176 = vmatprep.subr.mxu0 0.0
  %177 = vmatpush1.msra.mxu0 %v123
  %178 = vmatprep.subr.mxu0 0.0
  %179 = vmatpush2.msra.mxu0 0.0
  %180 = vmatprep.subr.mxu0 0.0
  %181 = vmatpush2.msra.mxu0 0.0
  %182 = vmatprep.subr.mxu0 0.0
  %183 = vmatpush2.msra.mxu0 0.0
  %184 = vmatprep.subr.mxu0 0.0
  %185 = vmatpush2.msra.mxu0 0.0
  %186 = vmatprep.subr.mxu0 0.0
  %187 = vmatpush2.msra.mxu0 0.0
  %188 = vmatprep.subr.mxu0 0.0
  %189 = vmatpush2.msra.mxu0 0.0
  %190 = vmatprep.subr.mxu0 0.0
  %191 = vmatpush2.msra.mxu0 0.0
  %192 = vmatprep.subr.mxu0 0.0
  %193 = vmatpush2.msra.mxu0 0.0
  %194 = vmatprep.subr.mxu0 0.0
  %195 = vmatpush2.msra.mxu0 0.0
  %196 = vmatprep.subr.mxu0 0.0
  %197 = vmatpush2.msra.mxu0 0.0
  %198 = vmatprep.subr.mxu0 0.0
  %199 = vmatpush2.msra.mxu0 0.0
  %200 = vmatprep.subr.mxu0 0.0
  %201 = vmatpush2.msra.mxu0 0.0
  %202 = vmatprep.subr.mxu0 0.0
  %203 = vmatpush2.msra.mxu0 0.0
  %204 = vmatprep.subr.mxu0 0.0
  %205 = vmatpush2.msra.mxu0 0.0
  %206 = vmatprep.subr.mxu0 0.0
  %207 = vmatpush2.msra.mxu0 0.0
  %208 = vmatprep.subr.mxu0 0.0
  %209 = vmatpush2.msra.mxu0 0.0
  %210 = vmatprep.mubr.f32.mxu0 0.0
  %211 = vmatmul.mubr.f32.gmra.mxu0 %v121
  %v212 = vpop.f32.mrf.mxu0
  %v213 = vadd.f32 %v144, %v212
  %v214 = vpop.f32.mrf.mxu0
  %215 = vmatprep.mubr.f32.mxu0 0.0
  %216 = vmatmul.mubr.f32.gmra.mxu0 %v122
  %v217 = vpop.f32.mrf.mxu0
  %v218 = vadd.f32 %v144, %v217
  %v219 = vpop.f32.mrf.mxu0
  %220 = vdwg.mxu0
  %v221 = vadd.f32 %v213, %v26
  %v222 = vadd.f32 %v218, %v27
  %v223 = vsel %vm39, %v221, 0.0
  %224 = vadd.xlane.f32.xlu0 %v223
  %v225 = vpop.xlane.xlu0 %224
  %v226 = vsel %vm39, %v222, 0.0
  %227 = vadd.xlane.f32.xlu0 %v226
  %v228 = vpop.xlane.xlu0 %227
  %v229 = vrcp.pop 32.0
  %v230 = vmul.f32 %v225, %v229
  %v231 = vmul.f32 %v228, %v229
  %v232 = vsub.f32 %v221, %v230
  %v233 = vsub.f32 %v222, %v231
  %v234 = vmul.f32 %v232, %v232
  %v235 = vmul.f32 %v233, %v233
  %v236 = vsel %vm39, %v234, 0.0
  %237 = vadd.xlane.f32.xlu0 %v236
  %v238 = vpop.xlane.xlu0 %237
  %v239 = vsel %vm39, %v235, 0.0
  %240 = vadd.xlane.f32.xlu0 %v239
  %v241 = vpop.xlane.xlu0 %240
  %v242 = vmul.f32 %v238, %v229
  %v243 = vmul.f32 %v241, %v229
  %v244 = vadd.f32 %v242, 1e-05
  %v245 = vadd.f32 %v243, 1e-05
  %v246 = vrsqrt.pop %v244
  %v247 = vrsqrt.pop %v245
  %v248 = vmul.f32 %v232, %v246
  %v249 = vmul.f32 %v233, %v247
  %v250 = vld [vmem:[%s5] sm:$0x1]
  %v252 = vlaneseq
  %v253 = vshrl.u32 %v252, 7
  %v254 = vsub.s32 0, %v253
  %v255 = vrot.slane %v250, %v254
  %v257 = vmul.f32 %v248, %v255
  %v258 = vmul.f32 %v249, %v255
  %v259 = vld [vmem:[%s6] sm:$0x1]
  %v261 = vlaneseq
  %v262 = vshrl.u32 %v261, 7
  %v263 = vsub.s32 0, %v262
  %v264 = vrot.slane %v259, %v263
  %v266 = vadd.f32 %v257, %v264
  %v267 = vadd.f32 %v258, %v264
  %268 = vst.msk [vmem:[%s7] sm:$0xff] %vm39, %v266
  %269 = vst.msk [vmem:[%s7 + $0x8] sm:$0xff] %vm39, %v267
  // Predicated region
  $region30: #{decoder_forward.9} parent=0 // pred_check
    _
  $region31: #{decoder_forward.9} parent=0 // pred_check_branch
    %271 = sbr.rel (0) target = $region33
  $region32: #{decoder_forward.9} parent=0 // pred_region
    _
  $region33: #{decoder_forward.9} parent=0 // pred_fallthru
    _
  // Predicated region
  $region34: #{decoder_forward.9} parent=0 // pred_check
    _
  $region35: #{decoder_forward.9} parent=0 // pred_check_branch
    %273 = sbr.rel (0) target = $region37
  $region36: #{decoder_forward.9} parent=0 // pred_region
    _
  $region37: #{decoder_forward.9} parent=0 // pred_fallthru
    _

// kernel: decoder_forward.7
$region0: #{decoder_forward.7}
  #allocation0 [shape = 'u32[]', space=smem, size = 0x4, offset = 0x4, fixed_abs, tag = 'smem constant byte address 0x4 - core index']
  #allocation1 [shape = 'u32[144,128]{1,0:T(1,128)}', space=vmem, size = 0x12000, scoped, tag = 'internal scratch']
  %s0 = inlined_call_operand.vmem [shape: f32[2,8,32], index: 0, kind: input, shape index: {}, may-alias: {0,1}]
  %s1 = inlined_call_operand.vmem [shape: f32[2,8,32], index: 1, kind: input, shape index: {}, may-alias: {0,1}]
  %s2 = inlined_call_operand.vmem [shape: f32[2,8,8], index: 2, kind: input, shape index: {}]
  %s3 = inlined_call_operand.vmem [shape: f32[32,32], index: 3, kind: input, shape index: {}]
  %s4 = inlined_call_operand.vmem [shape: f32[1,32], index: 4, kind: input, shape index: {}]
  %s5 = inlined_call_operand.vmem [shape: f32[32,64], index: 5, kind: input, shape index: {}]
  %s6 = inlined_call_operand.vmem [shape: f32[1,64], index: 6, kind: input, shape index: {}]
  %s7 = inlined_call_operand.vmem [shape: f32[32,32], index: 7, kind: input, shape index: {}]
  %s8 = inlined_call_operand.vmem [shape: f32[1,32], index: 8, kind: input, shape index: {}]
  %s9 = inlined_call_operand.vmem [shape: f32[1,32], index: 9, kind: input, shape index: {}]
  %s10 = inlined_call_operand.vmem [shape: f32[1,32], index: 10, kind: input, shape index: {}]
  %s11 = inlined_call_operand.vmem [shape: f32[2,8,32], index: 11, kind: output, shape index: {}]
  %s12 = sld [smem:[#allocation0]]
  $region77: #{decoder_forward.7} parent=0
    _
  %s14 = ssub.s32 1, %s12
  %s15 = scalar_select 0, %s14, %s12
  loop: start=0, step=1, limit=4
  $region2: #{decoder_forward.7} parent=0 // loop_pre_header
    _
  $region3: #{decoder_forward.7} parent=0 // loop_header
    %s17 = sphi 0, %s21
    %p18 = scmp.ge.s32.totalorder %s17, 4
    %s27 = sphi 0, %s29
    %s30 = sphi 0, %s27
    %s31 = sphi 0, %s30
    %s47 = sphi 0, %s31
    %s53 = sphi 0, %s55
    %s56 = sphi 0, %s53
    %s57 = sphi 0, %s56
    %s73 = sphi 0, %s57
    %s79 = sphi 0, %s81
    %s82 = sphi 0, %s79
    %s83 = sphi 0, %s82
    %s99 = sphi 0, %s83
    %s103 = sphi 0, %s103
    %s105 = sphi 0, %s103
    %s106 = sphi 0, %s105
    %s120 = sphi 0, %s106
    %s124 = sphi 0, %s124
    %s126 = sphi 0, %s124
    %s127 = sphi 0, %s126
    %s141 = sphi 0, %s127
    %s145 = sphi 0, %s145
    %s147 = sphi 0, %s145
    %s148 = sphi 0, %s147
    %s162 = sphi 0, %s148
    %s166 = sphi 0, %s166
    %s168 = sphi 0, %s166
    %s169 = sphi 0, %s168
    %s183 = sphi 0, %s169
    %s187 = sphi 0, %s187
    %s189 = sphi 0, %s187
    %s190 = sphi 0, %s189
    %s204 = sphi 0, %s190
    %s208 = sphi 0, %s208
    %s210 = sphi 0, %s208
    %s211 = sphi 0, %s210
    %s225 = sphi 0, %s211
    %s229 = sphi 0, %s229
    %s231 = sphi 0, %s229
    %s232 = sphi 0, %s231
    %s246 = sphi 0, %s232
    %s250 = sphi 0, %s250
    %s252 = sphi 0, %s250
    %s253 = sphi 0, %s252
    %s267 = sphi 0, %s253
    %s273 = sphi 0, %s275
    %s276 = sphi 0, %s273
    %s277 = sphi 0, %s276
    %s293 = sphi 0, %s277
  $region4: #{decoder_forward.7} parent=0 // loop_header_branch
    %20 = sbr.rel (%p18) target = $region8
  $region5: #{decoder_forward.7} parent=0 // loop_body
    %s22 = ssub.s32 %s17, 1
    %s23 = ssub.s32 %s17, 2
    %s24 = sadd.s32 %s17, 1
    %s25 = ssub.s32 %s17, %s24
    %p26 = scmp.eq.s32.totalorder %s25, 0
    %s28 = sadd.s32 %s27, 1
    %s29 = scalar_select %p26, %s27, %s28
    %p32 = pneg %p26
    %p33 = scmp.eq.s32.totalorder %s17, 1
    %p34 = por %p32, %p33
    %p35 = scmp.ne.s32.totalorder %s27, %s30
    %p36 = scmp.eq.s32.totalorder %s17, 0
    %p37 = por %p35, %p36
    %p38 = scmp.ne.s32.totalorder %s27, %s30
    %p39 = scmp.eq.s32.totalorder %s22, 1
    %p40 = por %p38, %p39
    %p41 = scmp.ne.s32.totalorder %s30, %s31
    %p42 = scmp.eq.s32.totalorder %s22, 0
    %p43 = por %p41, %p42
    %p44 = scmp.ne.s32.totalorder %s30, %s31
    %p45 = scmp.eq.s32.totalorder %s23, 1
    %p46 = por %p44, %p45
    %p48 = scmp.ne.s32.totalorder %s31, %s47
    %p49 = scmp.eq.s32.totalorder %s23, 0
    %p50 = por %p48, %p49
    %s51 = ssub.s32 %s17, %s24
    %p52 = scmp.eq.s32.totalorder %s51, 0
    %s54 = sadd.s32 %s53, 1
    %s55 = scalar_select %p52, %s53, %s54
    %p58 = pneg %p52
    %p59 = scmp.eq.s32.totalorder %s17, 1
    %p60 = por %p58, %p59
    %p61 = scmp.ne.s32.totalorder %s53, %s56
    %p62 = scmp.eq.s32.totalorder %s17, 0
    %p63 = por %p61, %p62
    %p64 = scmp.ne.s32.totalorder %s53, %s56
    %p65 = scmp.eq.s32.totalorder %s22, 1
    %p66 = por %p64, %p65
    %p67 = scmp.ne.s32.totalorder %s56, %s57
    %p68 = scmp.eq.s32.totalorder %s22, 0
    %p69 = por %p67, %p68
    %p70 = scmp.ne.s32.totalorder %s56, %s57
    %p71 = scmp.eq.s32.totalorder %s23, 1
    %p72 = por %p70, %p71
    %p74 = scmp.ne.s32.totalorder %s57, %s73
    %p75 = scmp.eq.s32.totalorder %s23, 0
    %p76 = por %p74, %p75
    %s77 = ssub.s32 %s17, %s24
    %p78 = scmp.eq.s32.totalorder %s77, 0
    %s80 = sadd.s32 %s79, 1
    %s81 = scalar_select %p78, %s79, %s80
    %p84 = pneg %p78
    %p85 = scmp.eq.s32.totalorder %s17, 1
    %p86 = por %p84, %p85
    %p87 = scmp.ne.s32.totalorder %s79, %s82
    %p88 = scmp.eq.s32.totalorder %s17, 0
    %p89 = por %p87, %p88
    %p90 = scmp.ne.s32.totalorder %s79, %s82
    %p91 = scmp.eq.s32.totalorder %s22, 1
    %p92 = por %p90, %p91
    %p93 = scmp.ne.s32.totalorder %s82, %s83
    %p94 = scmp.eq.s32.totalorder %s22, 0
    %p95 = por %p93, %p94
    %p96 = scmp.ne.s32.totalorder %s82, %s83
    %p97 = scmp.eq.s32.totalorder %s23, 1
    %p98 = por %p96, %p97
    %p100 = scmp.ne.s32.totalorder %s83, %s99
    %p101 = scmp.eq.s32.totalorder %s23, 0
    %p102 = por %p100, %p101
    %s104 = sadd.s32 %s103, 1
    %p107 = scmp.eq.s32.totalorder %s17, 1
    %p108 = scmp.ne.s32.totalorder %s103, %s105
    %p109 = scmp.eq.s32.totalorder %s17, 0
    %p110 = por %p108, %p109
    %p111 = scmp.ne.s32.totalorder %s103, %s105
    %p112 = scmp.eq.s32.totalorder %s22, 1
    %p113 = por %p111, %p112
    %p114 = scmp.ne.s32.totalorder %s105, %s106
    %p115 = scmp.eq.s32.totalorder %s22, 0
    %p116 = por %p114, %p115
    %p117 = scmp.ne.s32.totalorder %s105, %s106
    %p118 = scmp.eq.s32.totalorder %s23, 1
    %p119 = por %p117, %p118
    %p121 = scmp.ne.s32.totalorder %s106, %s120
    %p122 = scmp.eq.s32.totalorder %s23, 0
    %p123 = por %p121, %p122
    %s125 = sadd.s32 %s124, 1
    %p128 = scmp.eq.s32.totalorder %s17, 1
    %p129 = scmp.ne.s32.totalorder %s124, %s126
    %p130 = scmp.eq.s32.totalorder %s17, 0
    %p131 = por %p129, %p130
    %p132 = scmp.ne.s32.totalorder %s124, %s126
    %p133 = scmp.eq.s32.totalorder %s22, 1
    %p134 = por %p132, %p133
    %p135 = scmp.ne.s32.totalorder %s126, %s127
    %p136 = scmp.eq.s32.totalorder %s22, 0
    %p137 = por %p135, %p136
    %p138 = scmp.ne.s32.totalorder %s126, %s127
    %p139 = scmp.eq.s32.totalorder %s23, 1
    %p140 = por %p138, %p139
    %p142 = scmp.ne.s32.totalorder %s127, %s141
    %p143 = scmp.eq.s32.totalorder %s23, 0
    %p144 = por %p142, %p143
    %s146 = sadd.s32 %s145, 1
    %p149 = scmp.eq.s32.totalorder %s17, 1
    %p150 = scmp.ne.s32.totalorder %s145, %s147
    %p151 = scmp.eq.s32.totalorder %s17, 0
    %p152 = por %p150, %p151
    %p153 = scmp.ne.s32.totalorder %s145, %s147
    %p154 = scmp.eq.s32.totalorder %s22, 1
    %p155 = por %p153, %p154
    %p156 = scmp.ne.s32.totalorder %s147, %s148
    %p157 = scmp.eq.s32.totalorder %s22, 0
    %p158 = por %p156, %p157
    %p159 = scmp.ne.s32.totalorder %s147, %s148
    %p160 = scmp.eq.s32.totalorder %s23, 1
    %p161 = por %p159, %p160
    %p163 = scmp.ne.s32.totalorder %s148, %s162
    %p164 = scmp.eq.s32.totalorder %s23, 0
    %p165 = por %p163, %p164
    %s167 = sadd.s32 %s166, 1
    %p170 = scmp.eq.s32.totalorder %s17, 1
    %p171 = scmp.ne.s32.totalorder %s166, %s168
    %p172 = scmp.eq.s32.totalorder %s17, 0
    %p173 = por %p171, %p172
    %p174 = scmp.ne.s32.totalorder %s166, %s168
    %p175 = scmp.eq.s32.totalorder %s22, 1
    %p176 = por %p174, %p175
    %p177 = scmp.ne.s32.totalorder %s168, %s169
    %p178 = scmp.eq.s32.totalorder %s22, 0
    %p179 = por %p177, %p178
    %p180 = scmp.ne.s32.totalorder %s168, %s169
    %p181 = scmp.eq.s32.totalorder %s23, 1
    %p182 = por %p180, %p181
    %p184 = scmp.ne.s32.totalorder %s169, %s183
    %p185 = scmp.eq.s32.totalorder %s23, 0
    %p186 = por %p184, %p185
    %s188 = sadd.s32 %s187, 1
    %p191 = scmp.eq.s32.totalorder %s17, 1
    %p192 = scmp.ne.s32.totalorder %s187, %s189
    %p193 = scmp.eq.s32.totalorder %s17, 0
    %p194 = por %p192, %p193
    %p195 = scmp.ne.s32.totalorder %s187, %s189
    %p196 = scmp.eq.s32.totalorder %s22, 1
    %p197 = por %p195, %p196
    %p198 = scmp.ne.s32.totalorder %s189, %s190
    %p199 = scmp.eq.s32.totalorder %s22, 0
    %p200 = por %p198, %p199
    %p201 = scmp.ne.s32.totalorder %s189, %s190
    %p202 = scmp.eq.s32.totalorder %s23, 1
    %p203 = por %p201, %p202
    %p205 = scmp.ne.s32.totalorder %s190, %s204
    %p206 = scmp.eq.s32.totalorder %s23, 0
    %p207 = por %p205, %p206
    %s209 = sadd.s32 %s208, 1
    %p212 = scmp.eq.s32.totalorder %s17, 1
    %p213 = scmp.ne.s32.totalorder %s208, %s210
    %p214 = scmp.eq.s32.totalorder %s17, 0
    %p215 = por %p213, %p214
    %p216 = scmp.ne.s32.totalorder %s208, %s210
    %p217 = scmp.eq.s32.totalorder %s22, 1
    %p218 = por %p216, %p217
    %p219 = scmp.ne.s32.totalorder %s210, %s211
    %p220 = scmp.eq.s32.totalorder %s22, 0
    %p221 = por %p219, %p220
    %p222 = scmp.ne.s32.totalorder %s210, %s211
    %p223 = scmp.eq.s32.totalorder %s23, 1
    %p224 = por %p222, %p223
    %p226 = scmp.ne.s32.totalorder %s211, %s225
    %p227 = scmp.eq.s32.totalorder %s23, 0
    %p228 = por %p226, %p227
    %s230 = sadd.s32 %s229, 1
    %p233 = scmp.eq.s32.totalorder %s17, 1
    %p234 = scmp.ne.s32.totalorder %s229, %s231
    %p235 = scmp.eq.s32.totalorder %s17, 0
    %p236 = por %p234, %p235
    %p237 = scmp.ne.s32.totalorder %s229, %s231
    %p238 = scmp.eq.s32.totalorder %s22, 1
    %p239 = por %p237, %p238
    %p240 = scmp.ne.s32.totalorder %s231, %s232
    %p241 = scmp.eq.s32.totalorder %s22, 0
    %p242 = por %p240, %p241
    %p243 = scmp.ne.s32.totalorder %s231, %s232
    %p244 = scmp.eq.s32.totalorder %s23, 1
    %p245 = por %p243, %p244
    %p247 = scmp.ne.s32.totalorder %s232, %s246
    %p248 = scmp.eq.s32.totalorder %s23, 0
    %p249 = por %p247, %p248
    %s251 = sadd.s32 %s250, 1
    %p254 = scmp.eq.s32.totalorder %s17, 1
    %p255 = scmp.ne.s32.totalorder %s250, %s252
    %p256 = scmp.eq.s32.totalorder %s17, 0
    %p257 = por %p255, %p256
    %p258 = scmp.ne.s32.totalorder %s250, %s252
    %p259 = scmp.eq.s32.totalorder %s22, 1
    %p260 = por %p258, %p259
    %p261 = scmp.ne.s32.totalorder %s252, %s253
    %p262 = scmp.eq.s32.totalorder %s22, 0
    %p263 = por %p261, %p262
    %p264 = scmp.ne.s32.totalorder %s252, %s253
    %p265 = scmp.eq.s32.totalorder %s23, 1
    %p266 = por %p264, %p265
    %p268 = scmp.ne.s32.totalorder %s253, %s267
    %p269 = scmp.eq.s32.totalorder %s23, 0
    %p270 = por %p268, %p269
    %s271 = ssub.s32 %s17, %s24
    %p272 = scmp.eq.s32.totalorder %s271, 0
    %s274 = sadd.s32 %s273, 1
    %s275 = scalar_select %p272, %s273, %s274
    %p278 = pneg %p272
    %p279 = scmp.eq.s32.totalorder %s17, 1
    %p280 = por %p278, %p279
    %p281 = scmp.ne.s32.totalorder %s273, %s276
    %p282 = scmp.eq.s32.totalorder %s17, 0
    %p283 = por %p281, %p282
    %p284 = scmp.ne.s32.totalorder %s273, %s276
    %p285 = scmp.eq.s32.totalorder %s22, 1
    %p286 = por %p284, %p285
    %p287 = scmp.ne.s32.totalorder %s276, %s277
    %p288 = scmp.eq.s32.totalorder %s22, 0
    %p289 = por %p287, %p288
    %p290 = scmp.ne.s32.totalorder %s276, %s277
    %p291 = scmp.eq.s32.totalorder %s23, 1
    %p292 = por %p290, %p291
    %p294 = scmp.ne.s32.totalorder %s277, %s293
    %p295 = scmp.eq.s32.totalorder %s23, 0
    %p296 = por %p294, %p295
    %p297 = scmp.le.s32.totalorder 1, %s17
    %p298 = scmp.lt.s32.totalorder %s17, 3
    %p299 = pnand %p297, %p298
    %p300 = pneg %p299
    // Predicated region
    $region9: #{decoder_forward.7} parent=5 // pred_check
      _
    $region10: #{decoder_forward.7} parent=5 // pred_check_branch
      %302 = sbr.rel (%p299) target = $region12
    $region11: #{decoder_forward.7} parent=5 // pred_region
      %s303 = ssub.s32 %s17, 1
      // Predicated region
      $region13: #{decoder_forward.7} parent=11 // pred_check
        %p304 = pneg %p116
      $region14: #{decoder_forward.7} parent=11 // pred_check_branch
        %306 = sbr.rel (%p304) target = $region16
      $region15: #{decoder_forward.7} parent=11 // pred_region
        _
      $region16: #{decoder_forward.7} parent=11 // pred_fallthru
        _
      // Predicated region
      $region17: #{decoder_forward.7} parent=11 // pred_check
        %p307 = pneg %p137
      $region18: #{decoder_forward.7} parent=11 // pred_check_branch
        %309 = sbr.rel (%p307) target = $region20
      $region19: #{decoder_forward.7} parent=11 // pred_region
        _
      $region20: #{decoder_forward.7} parent=11 // pred_fallthru
        _
      // Predicated region
      $region21: #{decoder_forward.7} parent=11 // pred_check
        %p310 = pneg %p158
      $region22: #{decoder_forward.7} parent=11 // pred_check_branch
        %312 = sbr.rel (%p310) target = $region24
      $region23: #{decoder_forward.7} parent=11 // pred_region
        _
      $region24: #{decoder_forward.7} parent=11 // pred_fallthru
        _
      // Predicated region
      $region25: #{decoder_forward.7} parent=11 // pred_check
        %p313 = pneg %p179
      $region26: #{decoder_forward.7} parent=11 // pred_check_branch
        %315 = sbr.rel (%p313) target = $region28
      $region27: #{decoder_forward.7} parent=11 // pred_region
        _
      $region28: #{decoder_forward.7} parent=11 // pred_fallthru
        _
      // Predicated region
      $region29: #{decoder_forward.7} parent=11 // pred_check
        %p316 = pneg %p200
      $region30: #{decoder_forward.7} parent=11 // pred_check_branch
        %318 = sbr.rel (%p316) target = $region32
      $region31: #{decoder_forward.7} parent=11 // pred_region
        _
      $region32: #{decoder_forward.7} parent=11 // pred_fallthru
        _
      // Predicated region
      $region33: #{decoder_forward.7} parent=11 // pred_check
        %p319 = pneg %p221
      $region34: #{decoder_forward.7} parent=11 // pred_check_branch
        %321 = sbr.rel (%p319) target = $region36
      $region35: #{decoder_forward.7} parent=11 // pred_region
        _
      $region36: #{decoder_forward.7} parent=11 // pred_fallthru
        _
      // Predicated region
      $region37: #{decoder_forward.7} parent=11 // pred_check
        %p322 = pneg %p242
      $region38: #{decoder_forward.7} parent=11 // pred_check_branch
        %324 = sbr.rel (%p322) target = $region40
      $region39: #{decoder_forward.7} parent=11 // pred_region
        _
      $region40: #{decoder_forward.7} parent=11 // pred_fallthru
        _
      // Predicated region
      $region41: #{decoder_forward.7} parent=11 // pred_check
        %p325 = pneg %p263
      $region42: #{decoder_forward.7} parent=11 // pred_check_branch
        %327 = sbr.rel (%p325) target = $region44
      $region43: #{decoder_forward.7} parent=11 // pred_region
        _
      $region44: #{decoder_forward.7} parent=11 // pred_fallthru
        _
    $region12: #{decoder_forward.7} parent=5 // pred_fallthru
      _
    %p328 = scmp.lt.s32.totalorder %s17, 2
    // Predicated region
    $region45: #{decoder_forward.7} parent=5 // pred_check
      %p329 = pneg %p328
    $region46: #{decoder_forward.7} parent=5 // pred_check_branch
      %331 = sbr.rel (%p329) target = $region48
    $region47: #{decoder_forward.7} parent=5 // pred_region
      // Predicated region
      $region49: #{decoder_forward.7} parent=47 // pred_check
        %p332 = pneg %p37
      $region50: #{decoder_forward.7} parent=47 // pred_check_branch
        %334 = sbr.rel (%p332) target = $region52
      $region51: #{decoder_forward.7} parent=47 // pred_region
        %p335 = scmp.lt.s32.totalorder %s17, 1
        %s336 = scalar_select %p335, %s17, 1
        %s337 = smul.addr %s336, 8
        %s338 = scalar_lea.vmem %s0, %s337
      $region52: #{decoder_forward.7} parent=47 // pred_fallthru
        _
      // Predicated region
      $region53: #{decoder_forward.7} parent=47 // pred_check
        %p339 = pneg %p63
      $region54: #{decoder_forward.7} parent=47 // pred_check_branch
        %341 = sbr.rel (%p339) target = $region56
      $region55: #{decoder_forward.7} parent=47 // pred_region
        %p342 = scmp.lt.s32.totalorder %s17, 1
        %s343 = scalar_select %p342, %s17, 1
        %s344 = smul.addr %s343, 8
        %s345 = scalar_lea.vmem %s1, %s344
      $region56: #{decoder_forward.7} parent=47 // pred_fallthru
        _
      // Predicated region
      $region57: #{decoder_forward.7} parent=47 // pred_check
        %p346 = pneg %p89
      $region58: #{decoder_forward.7} parent=47 // pred_check_branch
        %348 = sbr.rel (%p346) target = $region60
      $region59: #{decoder_forward.7} parent=47 // pred_region
        %p349 = scmp.lt.s32.totalorder %s17, 1
        %s350 = scalar_select %p349, %s17, 1
        %s351 = smul.addr %s350, 8
        %s352 = scalar_lea.vmem %s2, %s351
      $region60: #{decoder_forward.7} parent=47 // pred_fallthru
        _
    $region48: #{decoder_forward.7} parent=5 // pred_fallthru
      _
    %p353 = scmp.le.s32.totalorder 1, %s17
    %p354 = scmp.lt.s32.totalorder %s17, 3
    %p355 = pnand %p353, %p354
    %p356 = pneg %p355
    // Predicated region
    $region61: #{decoder_forward.7} parent=5 // pred_check
      _
    $region62: #{decoder_forward.7} parent=5 // pred_check_branch
      %358 = sbr.rel (%p355) target = $region64
    $region63: #{decoder_forward.7} parent=5 // pred_region
      %s359 = ssub.s32 %s17, 1
      %p360 = scmp.lt.s32.totalorder %s22, 1
      %s361 = scalar_select %p360, %s22, 1
      %s362 = smul.addr %s361, 8
      %s363 = scalar_lea.vmem %s0, %s362
      %p364 = pneg %p43
      %p365 = pneg %p40
      %p366 = scmp.lt.s32.totalorder %s22, 1
      %s367 = scalar_select %p366, %s22, 1
      %s368 = smul.addr %s367, 8
      %s369 = scalar_lea.vmem %s1, %s368
      %p370 = pneg %p69
      %p371 = pneg %p66
      %p372 = scmp.lt.s32.totalorder %s22, 1
      %s373 = scalar_select %p372, %s22, 1
      %s374 = smul.addr %s373, 8
      %s375 = scalar_lea.vmem %s2, %s374
      %p376 = pneg %p95
      %p377 = pneg %p92
      %p378 = pneg %p116
      %p379 = pneg %p113
      %p380 = pneg %p137
      %p381 = pneg %p134
      %p382 = pneg %p158
      %p383 = pneg %p155
      %p384 = pneg %p179
      %p385 = pneg %p176
      %p386 = pneg %p200
      %p387 = pneg %p197
      %p388 = pneg %p221
      %p389 = pneg %p218
      %p390 = pneg %p242
      %p391 = pneg %p239
      %p392 = pneg %p263
      %p393 = pneg %p260
      %p394 = pneg %p289
      %p395 = pneg %p286
      %p396 = scmp.lt.s32.totalorder %s22, 1
      %s397 = scalar_select %p396, %s22, 1
      %s398 = smul.addr %s397, 8
      %s399 = scalar_lea.vmem %s11, %s398
      %p400 = scmp.lt.s32.totalorder %s22, 1
      %s401 = scalar_select %p400, %s22, 1
      %s402 = smul.addr %s401, 8
      %s403 = scalar_lea.vmem %s0, %s402
      %p404 = scmp.lt.s32.totalorder %s22, 1
      %s405 = scalar_select %p404, %s22, 1
      %s406 = smul.addr %s405, 8
      %s407 = scalar_lea.vmem %s1, %s406
      %p408 = scmp.lt.s32.totalorder %s22, 1
      %s409 = scalar_select %p408, %s22, 1
      %s410 = smul.addr %s409, 8
      %s411 = scalar_lea.vmem %s2, %s410
      %p412 = scmp.lt.s32.totalorder %s22, 1
      %s413 = scalar_select %p412, %s22, 1
      %s414 = smul.addr %s413, 8
      %s415 = scalar_lea.vmem %s11, %s414
      %v416 = vld [vmem:[%s403] sm:$0xff]
      %v417 = vld [vmem:[%s407] sm:$0xff]
      %v418 = vld [vmem:[%s411] sm:$0xff]
      %v419 = vld [vmem:[%s3] sm:$0xff]
      %v420 = vld [vmem:[%s3 + $0x8] sm:$0xff]
      %v421 = vld [vmem:[%s3 + $0x10] sm:$0xff]
      %v422 = vld [vmem:[%s3 + $0x18] sm:$0xff]
      %v423 = vld [vmem:[%s4] sm:$0x1]
      %v425 = vlaneseq
      %v426 = vshrl.u32 %v425, 7
      %v427 = vsub.s32 0, %v426
      %v428 = vrot.slane %v423, %v427
      %vm430 = vcmask 261120
      %v432 = vsel %vm430, %v416, 0
      %434 = vmatprep.subr.mxu0 0.0
      %435 = vmatpush1.msra.mxu0 0.0
      %436 = vmatprep.subr.mxu0 0.0
      %437 = vmatpush1.msra.mxu0 0.0
      %438 = vmatprep.subr.mxu0 0.0
      %439 = vmatpush1.msra.mxu0 0.0
      %440 = vmatprep.subr.mxu0 0.0
      %441 = vmatpush1.msra.mxu0 0.0
      %442 = vmatprep.subr.mxu0 0.0
      %443 = vmatpush1.msra.mxu0 0.0
      %444 = vmatprep.subr.mxu0 0.0
      %445 = vmatpush1.msra.mxu0 0.0
      %446 = vmatprep.subr.mxu0 0.0
      %447 = vmatpush1.msra.mxu0 0.0
      %448 = vmatprep.subr.mxu0 0.0
      %449 = vmatpush1.msra.mxu0 0.0
      %450 = vmatprep.subr.mxu0 0.0
      %451 = vmatpush1.msra.mxu0 0.0
      %452 = vmatprep.subr.mxu0 0.0
      %453 = vmatpush1.msra.mxu0 0.0
      %454 = vmatprep.subr.mxu0 0.0
      %455 = vmatpush1.msra.mxu0 0.0
      %456 = vmatprep.subr.mxu0 0.0
      %457 = vmatpush1.msra.mxu0 0.0
      %458 = vmatprep.subr.mxu0 0.0
      %459 = vmatpush1.msra.mxu0 %v422
      %460 = vmatprep.subr.mxu0 0.0
      %461 = vmatpush1.msra.mxu0 %v421
      %462 = vmatprep.subr.mxu0 0.0
      %463 = vmatpush1.msra.mxu0 %v420
      %464 = vmatprep.subr.mxu0 0.0
      %465 = vmatpush1.msra.mxu0 %v419
      %466 = vmatprep.subr.mxu0 0.0
      %467 = vmatpush2.msra.mxu0 0.0
      %468 = vmatprep.subr.mxu0 0.0
      %469 = vmatpush2.msra.mxu0 0.0
      %470 = vmatprep.subr.mxu0 0.0
      %471 = vmatpush2.msra.mxu0 0.0
      %472 = vmatprep.subr.mxu0 0.0
      %473 = vmatpush2.msra.mxu0 0.0
      %474 = vmatprep.subr.mxu0 0.0
      %475 = vmatpush2.msra.mxu0 0.0
      %476 = vmatprep.subr.mxu0 0.0
      %477 = vmatpush2.msra.mxu0 0.0
      %478 = vmatprep.subr.mxu0 0.0
      %479 = vmatpush2.msra.mxu0 0.0
      %480 = vmatprep.subr.mxu0 0.0
      %481 = vmatpush2.msra.mxu0 0.0
      %482 = vmatprep.subr.mxu0 0.0
      %483 = vmatpush2.msra.mxu0 0.0
      %484 = vmatprep.subr.mxu0 0.0
      %485 = vmatpush2.msra.mxu0 0.0
      %486 = vmatprep.subr.mxu0 0.0
      %487 = vmatpush2.msra.mxu0 0.0
      %488 = vmatprep.subr.mxu0 0.0
      %489 = vmatpush2.msra.mxu0 0.0
      %490 = vmatprep.subr.mxu0 0.0
      %491 = vmatpush2.msra.mxu0 0.0
      %492 = vmatprep.subr.mxu0 0.0
      %493 = vmatpush2.msra.mxu0 0.0
      %494 = vmatprep.subr.mxu0 0.0
      %495 = vmatpush2.msra.mxu0 0.0
      %496 = vmatprep.subr.mxu0 0.0
      %497 = vmatpush2.msra.mxu0 0.0
      %498 = vmatprep.mubr.f32.mxu0 0.0
      %499 = vmatmul.mubr.f32.gmra.mxu0 %v432
      %v500 = vpop.f32.mrf.mxu0
      %v501 = vadd.f32 %v428, %v500
      %v502 = vpop.f32.mrf.mxu0
      %503 = vdwg.mxu0
      %v504 = vld [vmem:[%s5] sm:$0xff]
      %v505 = vld [vmem:[%s5 + $0x8] sm:$0xff]
      %v506 = vld [vmem:[%s5 + $0x10] sm:$0xff]
      %v507 = vld [vmem:[%s5 + $0x18] sm:$0xff]
      %v508 = vld [vmem:[%s6] sm:$0x1]
      %v510 = vlaneseq
      %v511 = vshrl.u32 %v510, 7
      %v512 = vsub.s32 0, %v511
      %v513 = vrot.slane %v508, %v512
      %v516 = vsel %vm430, %v417, 0
      %518 = vmatprep.subr.mxu0 0.0
      %519 = vmatpush1.msra.mxu0 0.0
      %520 = vmatprep.subr.mxu0 0.0
      %521 = vmatpush1.msra.mxu0 0.0
      %522 = vmatprep.subr.mxu0 0.0
      %523 = vmatpush1.msra.mxu0 0.0
      %524 = vmatprep.subr.mxu0 0.0
      %525 = vmatpush1.msra.mxu0 0.0
      %526 = vmatprep.subr.mxu0 0.0
      %527 = vmatpush1.msra.mxu0 0.0
      %528 = vmatprep.subr.mxu0 0.0
      %529 = vmatpush1.msra.mxu0 0.0
      %530 = vmatprep.subr.mxu0 0.0
      %531 = vmatpush1.msra.mxu0 0.0
      %532 = vmatprep.subr.mxu0 0.0
      %533 = vmatpush1.msra.mxu0 0.0
      %534 = vmatprep.subr.mxu0 0.0
      %535 = vmatpush1.msra.mxu0 0.0
      %536 = vmatprep.subr.mxu0 0.0
      %537 = vmatpush1.msra.mxu0 0.0
      %538 = vmatprep.subr.mxu0 0.0
      %539 = vmatpush1.msra.mxu0 0.0
      %540 = vmatprep.subr.mxu0 0.0
      %541 = vmatpush1.msra.mxu0 0.0
      %542 = vmatprep.subr.mxu0 0.0
      %543 = vmatpush1.msra.mxu0 %v507
      %544 = vmatprep.subr.mxu0 0.0
      %545 = vmatpush1.msra.mxu0 %v506
      %546 = vmatprep.subr.mxu0 0.0
      %547 = vmatpush1.msra.mxu0 %v505
      %548 = vmatprep.subr.mxu0 0.0
      %549 = vmatpush1.msra.mxu0 %v504
      %550 = vmatprep.subr.mxu0 0.0
      %551 = vmatpush2.msra.mxu0 0.0
      %552 = vmatprep.subr.mxu0 0.0
      %553 = vmatpush2.msra.mxu0 0.0
      %554 = vmatprep.subr.mxu0 0.0
      %555 = vmatpush2.msra.mxu0 0.0
      %556 = vmatprep.subr.mxu0 0.0
      %557 = vmatpush2.msra.mxu0 0.0
      %558 = vmatprep.subr.mxu0 0.0
      %559 = vmatpush2.msra.mxu0 0.0
      %560 = vmatprep.subr.mxu0 0.0
      %561 = vmatpush2.msra.mxu0 0.0
      %562 = vmatprep.subr.mxu0 0.0
      %563 = vmatpush2.msra.mxu0 0.0
      %564 = vmatprep.subr.mxu0 0.0
      %565 = vmatpush2.msra.mxu0 0.0
      %566 = vmatprep.subr.mxu0 0.0
      %567 = vmatpush2.msra.mxu0 0.0
      %568 = vmatprep.subr.mxu0 0.0
      %569 = vmatpush2.msra.mxu0 0.0
      %570 = vmatprep.subr.mxu0 0.0
      %571 = vmatpush2.msra.mxu0 0.0
      %572 = vmatprep.subr.mxu0 0.0
      %573 = vmatpush2.msra.mxu0 0.0
      %574 = vmatprep.subr.mxu0 0.0
      %575 = vmatpush2.msra.mxu0 0.0
      %576 = vmatprep.subr.mxu0 0.0
      %577 = vmatpush2.msra.mxu0 0.0
      %578 = vmatprep.subr.mxu0 0.0
      %579 = vmatpush2.msra.mxu0 0.0
      %580 = vmatprep.subr.mxu0 0.0
      %581 = vmatpush2.msra.mxu0 0.0
      %582 = vmatprep.mubr.f32.mxu0 0.0
      %583 = vmatmul.mubr.f32.gmra.mxu0 %v516
      %v584 = vpop.f32.mrf.mxu0
      %v585 = vadd.f32 %v513, %v584
      %v586 = vpop.f32.mrf.mxu0
      %587 = vdwg.mxu0
      %vm588 = vcmask 64512
      %v590 = vsel %vm588, %v501, 0
      %v593 = vsel %vm588, %v585, 0
      %595 = vmatprep.subr.mxu0 0.0
      %596 = vmatpush1.xpose.msra.mxu0 0.0
      %597 = vmatprep.subr.mxu0 0.0
      %598 = vmatpush1.xpose.msra.mxu0 0.0
      %599 = vmatprep.subr.mxu0 0.0
      %600 = vmatpush1.xpose.msra.mxu0 0.0
      %601 = vmatprep.subr.mxu0 0.0
      %602 = vmatpush1.xpose.msra.mxu0 0.0
      %603 = vmatprep.subr.mxu0 0.0
      %604 = vmatpush1.xpose.msra.mxu0 0.0
      %605 = vmatprep.subr.mxu0 0.0
      %606 = vmatpush1.xpose.msra.mxu0 0.0
      %607 = vmatprep.subr.mxu0 0.0
      %608 = vmatpush1.xpose.msra.mxu0 0.0
      %609 = vmatprep.subr.mxu0 0.0
      %610 = vmatpush1.xpose.msra.mxu0 0.0
      %611 = vmatprep.subr.mxu0 0.0
      %612 = vmatpush1.xpose.msra.mxu0 0.0
      %613 = vmatprep.subr.mxu0 0.0
      %614 = vmatpush1.xpose.msra.mxu0 0.0
      %615 = vmatprep.subr.mxu0 0.0
      %616 = vmatpush1.xpose.msra.mxu0 0.0
      %617 = vmatprep.subr.mxu0 0.0
      %618 = vmatpush1.xpose.msra.mxu0 0.0
      %619 = vmatprep.subr.mxu0 0.0
      %620 = vmatpush1.xpose.msra.mxu0 0.0
      %621 = vmatprep.subr.mxu0 0.0
      %622 = vmatpush1.xpose.msra.mxu0 0.0
      %623 = vmatprep.subr.mxu0 0.0
      %624 = vmatpush1.xpose.msra.mxu0 0.0
      %625 = vmatprep.subr.mxu0 0.0
      %626 = vmatpush1.xpose.msra.mxu0 %v593
      %627 = vmatprep.subr.mxu0 0.0
      %628 = vmatpush2.xpose.msra.mxu0 0.0
      %629 = vmatprep.subr.mxu0 0.0
      %630 = vmatpush2.xpose.msra.mxu0 0.0
      %631 = vmatprep.subr.mxu0 0.0
      %632 = vmatpush2.xpose.msra.mxu0 0.0
      %633 = vmatprep.subr.mxu0 0.0
      %634 = vmatpush2.xpose.msra.mxu0 0.0
      %635 = vmatprep.subr.mxu0 0.0
      %636 = vmatpush2.xpose.msra.mxu0 0.0
      %637 = vmatprep.subr.mxu0 0.0
      %638 = vmatpush2.xpose.msra.mxu0 0.0
      %639 = vmatprep.subr.mxu0 0.0
      %640 = vmatpush2.xpose.msra.mxu0 0.0
      %641 = vmatprep.subr.mxu0 0.0
      %642 = vmatpush2.xpose.msra.mxu0 0.0
      %643 = vmatprep.subr.mxu0 0.0
      %644 = vmatpush2.xpose.msra.mxu0 0.0
      %645 = vmatprep.subr.mxu0 0.0
      %646 = vmatpush2.xpose.msra.mxu0 0.0
      %647 = vmatprep.subr.mxu0 0.0
      %648 = vmatpush2.xpose.msra.mxu0 0.0
      %649 = vmatprep.subr.mxu0 0.0
      %650 = vmatpush2.xpose.msra.mxu0 0.0
      %651 = vmatprep.subr.mxu0 0.0
      %652 = vmatpush2.xpose.msra.mxu0 0.0
      %653 = vmatprep.subr.mxu0 0.0
      %654 = vmatpush2.xpose.msra.mxu0 0.0
      %655 = vmatprep.subr.mxu0 0.0
      %656 = vmatpush2.xpose.msra.mxu0 0.0
      %657 = vmatprep.subr.mxu0 0.0
      %658 = vmatpush2.xpose.msra.mxu0 0.0
      %659 = vmatprep.mubr.f32.mxu0 0.0
      %660 = vmatmul.mubr.f32.gmra.mxu0 %v590
      %v661 = vpop.f32.mrf.mxu0
      %v662 = vadd.f32 0.0, %v661
      %v663 = vpop.f32.mrf.mxu0
      %664 = vdwg.mxu0
      %vm665 = vcmp.eq.f32.partialorder %v418, 0.0
      %v666 = vsel %vm665, -1e+20, %v662
      %v667 = vmul.f32 %v666, 0.17677669
      %v668 = vsel %vm588, %v667, -inf
      %669 = vmax.xlane.f32.xlu0 %v668
      %v670 = vpop.xlane.xlu0 %669
      %v671 = vsub.f32 %v667, %v670
      %v672 = vmul.f32 %v671, 1.442695
      %v673 = vpow.pop %v672
      %v674 = vsel %vm588, %v673, 0.0
      %675 = vadd.xlane.f32.xlu0 %v674
      %v676 = vpop.xlane.xlu0 %675
      %v677 = vrcp.pop %v676
      %v678 = vmul.f32 %v673, %v677
      %679 = vrot.lane.b32.xlu0 %v585, 96
      %v680 = vpop.permute.xlu0 %679
      %v683 = vsel %vm588, %v678, 0
      %685 = vmatprep.subr.mxu0 0.0
      %686 = vmatpush1.msra.mxu0 0.0
      %687 = vmatprep.subr.mxu0 0.0
      %688 = vmatpush1.msra.mxu0 0.0
      %689 = vmatprep.subr.mxu0 0.0
      %690 = vmatpush1.msra.mxu0 0.0
      %691 = vmatprep.subr.mxu0 0.0
      %692 = vmatpush1.msra.mxu0 0.0
      %693 = vmatprep.subr.mxu0 0.0
      %694 = vmatpush1.msra.mxu0 0.0
      %695 = vmatprep.subr.mxu0 0.0
      %696 = vmatpush1.msra.mxu0 0.0
      %697 = vmatprep.subr.mxu0 0.0
      %698 = vmatpush1.msra.mxu0 0.0
      %699 = vmatprep.subr.mxu0 0.0
      %700 = vmatpush1.msra.mxu0 0.0
      %701 = vmatprep.subr.mxu0 0.0
      %702 = vmatpush1.msra.mxu0 0.0
      %703 = vmatprep.subr.mxu0 0.0
      %704 = vmatpush1.msra.mxu0 0.0
      %705 = vmatprep.subr.mxu0 0.0
      %706 = vmatpush1.msra.mxu0 0.0
      %707 = vmatprep.subr.mxu0 0.0
      %708 = vmatpush1.msra.mxu0 0.0
      %709 = vmatprep.subr.mxu0 0.0
      %710 = vmatpush1.msra.mxu0 0.0
      %711 = vmatprep.subr.mxu0 0.0
      %712 = vmatpush1.msra.mxu0 0.0
      %713 = vmatprep.subr.mxu0 0.0
      %714 = vmatpush1.msra.mxu0 0.0
      %715 = vmatprep.subr.mxu0 0.0
      %716 = vmatpush1.msra.mxu0 %v680
      %717 = vmatprep.subr.mxu0 0.0
      %718 = vmatpush2.msra.mxu0 0.0
      %719 = vmatprep.subr.mxu0 0.0
      %720 = vmatpush2.msra.mxu0 0.0
      %721 = vmatprep.subr.mxu0 0.0
      %722 = vmatpush2.msra.mxu0 0.0
      %723 = vmatprep.subr.mxu0 0.0
      %724 = vmatpush2.msra.mxu0 0.0
      %725 = vmatprep.subr.mxu0 0.0
      %726 = vmatpush2.msra.mxu0 0.0
      %727 = vmatprep.subr.mxu0 0.0
      %728 = vmatpush2.msra.mxu0 0.0
      %729 = vmatprep.subr.mxu0 0.0
      %730 = vmatpush2.msra.mxu0 0.0
      %731 = vmatprep.subr.mxu0 0.0
      %732 = vmatpush2.msra.mxu0 0.0
      %733 = vmatprep.subr.mxu0 0.0
      %734 = vmatpush2.msra.mxu0 0.0
      %735 = vmatprep.subr.mxu0 0.0
      %736 = vmatpush2.msra.mxu0 0.0
      %737 = vmatprep.subr.mxu0 0.0
      %738 = vmatpush2.msra.mxu0 0.0
      %739 = vmatprep.subr.mxu0 0.0
      %740 = vmatpush2.msra.mxu0 0.0
      %741 = vmatprep.subr.mxu0 0.0
      %742 = vmatpush2.msra.mxu0 0.0
      %743 = vmatprep.subr.mxu0 0.0
      %744 = vmatpush2.msra.mxu0 0.0
      %745 = vmatprep.subr.mxu0 0.0
      %746 = vmatpush2.msra.mxu0 0.0
      %747 = vmatprep.subr.mxu0 0.0
      %748 = vmatpush2.msra.mxu0 0.0
      %749 = vmatprep.mubr.f32.mxu0 0.0
      %750 = vmatmul.mubr.f32.gmra.mxu0 %v683
      %v751 = vpop.f32.mrf.mxu0
      %v752 = vadd.f32 0.0, %v751
      %v753 = vpop.f32.mrf.mxu0
      %754 = vdwg.mxu0
      %755 = vrot.lane.b32.xlu0 %v501, 120
      %v756 = vpop.permute.xlu0 %755
      %757 = vrot.lane.b32.xlu0 %v585, 120
      %v758 = vpop.permute.xlu0 %757
      %v759 = vsel %vm588, %v756, 0
      %v761 = vsel %vm588, %v758, 0
      %763 = vmatprep.subr.mxu0 0.0
      %764 = vmatpush1.xpose.msra.mxu0 0.0
      %765 = vmatprep.subr.mxu0 0.0
      %766 = vmatpush1.xpose.msra.mxu0 0.0
      %767 = vmatprep.subr.mxu0 0.0
      %768 = vmatpush1.xpose.msra.mxu0 0.0
      %769 = vmatprep.subr.mxu0 0.0
      %770 = vmatpush1.xpose.msra.mxu0 0.0
      %771 = vmatprep.subr.mxu0 0.0
      %772 = vmatpush1.xpose.msra.mxu0 0.0
      %773 = vmatprep.subr.mxu0 0.0
      %774 = vmatpush1.xpose.msra.mxu0 0.0
      %775 = vmatprep.subr.mxu0 0.0
      %776 = vmatpush1.xpose.msra.mxu0 0.0
      %777 = vmatprep.subr.mxu0 0.0
      %778 = vmatpush1.xpose.msra.mxu0 0.0
      %779 = vmatprep.subr.mxu0 0.0
      %780 = vmatpush1.xpose.msra.mxu0 0.0
      %781 = vmatprep.subr.mxu0 0.0
      %782 = vmatpush1.xpose.msra.mxu0 0.0
      %783 = vmatprep.subr.mxu0 0.0
      %784 = vmatpush1.xpose.msra.mxu0 0.0
      %785 = vmatprep.subr.mxu0 0.0
      %786 = vmatpush1.xpose.msra.mxu0 0.0
      %787 = vmatprep.subr.mxu0 0.0
      %788 = vmatpush1.xpose.msra.mxu0 0.0
      %789 = vmatprep.subr.mxu0 0.0
      %790 = vmatpush1.xpose.msra.mxu0 0.0
      %791 = vmatprep.subr.mxu0 0.0
      %792 = vmatpush1.xpose.msra.mxu0 0.0
      %793 = vmatprep.subr.mxu0 0.0
      %794 = vmatpush1.xpose.msra.mxu0 %v761
      %795 = vmatprep.subr.mxu0 0.0
      %796 = vmatpush2.xpose.msra.mxu0 0.0
      %797 = vmatprep.subr.mxu0 0.0
      %798 = vmatpush2.xpose.msra.mxu0 0.0
      %799 = vmatprep.subr.mxu0 0.0
      %800 = vmatpush2.xpose.msra.mxu0 0.0
      %801 = vmatprep.subr.mxu0 0.0
      %802 = vmatpush2.xpose.msra.mxu0 0.0
      %803 = vmatprep.subr.mxu0 0.0
      %804 = vmatpush2.xpose.msra.mxu0 0.0
      %805 = vmatprep.subr.mxu0 0.0
      %806 = vmatpush2.xpose.msra.mxu0 0.0
      %807 = vmatprep.subr.mxu0 0.0
      %808 = vmatpush2.xpose.msra.mxu0 0.0
      %809 = vmatprep.subr.mxu0 0.0
      %810 = vmatpush2.xpose.msra.mxu0 0.0
      %811 = vmatprep.subr.mxu0 0.0
      %812 = vmatpush2.xpose.msra.mxu0 0.0
      %813 = vmatprep.subr.mxu0 0.0
      %814 = vmatpush2.xpose.msra.mxu0 0.0
      %815 = vmatprep.subr.mxu0 0.0
      %816 = vmatpush2.xpose.msra.mxu0 0.0
      %817 = vmatprep.subr.mxu0 0.0
      %818 = vmatpush2.xpose.msra.mxu0 0.0
      %819 = vmatprep.subr.mxu0 0.0
      %820 = vmatpush2.xpose.msra.mxu0 0.0
      %821 = vmatprep.subr.mxu0 0.0
      %822 = vmatpush2.xpose.msra.mxu0 0.0
      %823 = vmatprep.subr.mxu0 0.0
      %824 = vmatpush2.xpose.msra.mxu0 0.0
      %825 = vmatprep.subr.mxu0 0.0
      %826 = vmatpush2.xpose.msra.mxu0 0.0
      %827 = vmatprep.mubr.f32.mxu0 0.0
      %828 = vmatmul.mubr.f32.gmra.mxu0 %v759
      %v829 = vpop.f32.mrf.mxu0
      %v830 = vadd.f32 0.0, %v829
      %v831 = vpop.f32.mrf.mxu0
      %832 = vdwg.mxu0
      %v833 = vsel %vm665, -1e+20, %v830
      %v834 = vmul.f32 %v833, 0.17677669
      %v835 = vsel %vm588, %v834, -inf
      %836 = vmax.xlane.f32.xlu0 %v835
      %v837 = vpop.xlane.xlu0 %836
      %v838 = vsub.f32 %v834, %v837
      %v839 = vmul.f32 %v838, 1.442695
      %v840 = vpow.pop %v839
      %v841 = vsel %vm588, %v840, 0.0
      %842 = vadd.xlane.f32.xlu0 %v841
      %v843 = vpop.xlane.xlu0 %842
      %v844 = vrcp.pop %v843
      %v845 = vmul.f32 %v840, %v844
      %846 = vrot.lane.b32.xlu0 %v585, 88
      %v847 = vpop.permute.xlu0 %846
      %v850 = vsel %vm588, %v845, 0
      %852 = vmatprep.subr.mxu0 0.0
      %853 = vmatpush1.msra.mxu0 0.0
      %854 = vmatprep.subr.mxu0 0.0
      %855 = vmatpush1.msra.mxu0 0.0
      %856 = vmatprep.subr.mxu0 0.0
      %857 = vmatpush1.msra.mxu0 0.0
      %858 = vmatprep.subr.mxu0 0.0
      %859 = vmatpush1.msra.mxu0 0.0
      %860 = vmatprep.subr.mxu0 0.0
      %861 = vmatpush1.msra.mxu0 0.0
      %862 = vmatprep.subr.mxu0 0.0
      %863 = vmatpush1.msra.mxu0 0.0
      %864 = vmatprep.subr.mxu0 0.0
      %865 = vmatpush1.msra.mxu0 0.0
      %866 = vmatprep.subr.mxu0 0.0
      %867 = vmatpush1.msra.mxu0 0.0
      %868 = vmatprep.subr.mxu0 0.0
      %869 = vmatpush1.msra.mxu0 0.0
      %870 = vmatprep.subr.mxu0 0.0
      %871 = vmatpush1.msra.mxu0 0.0
      %872 = vmatprep.subr.mxu0 0.0
      %873 = vmatpush1.msra.mxu0 0.0
      %874 = vmatprep.subr.mxu0 0.0
      %875 = vmatpush1.msra.mxu0 0.0
      %876 = vmatprep.subr.mxu0 0.0
      %877 = vmatpush1.msra.mxu0 0.0
      %878 = vmatprep.subr.mxu0 0.0
      %879 = vmatpush1.msra.mxu0 0.0
      %880 = vmatprep.subr.mxu0 0.0
      %881 = vmatpush1.msra.mxu0 0.0
      %882 = vmatprep.subr.mxu0 0.0
      %883 = vmatpush1.msra.mxu0 %v847
      %884 = vmatprep.subr.mxu0 0.0
      %885 = vmatpush2.msra.mxu0 0.0
      %886 = vmatprep.subr.mxu0 0.0
      %887 = vmatpush2.msra.mxu0 0.0
      %888 = vmatprep.subr.mxu0 0.0
      %889 = vmatpush2.msra.mxu0 0.0
      %890 = vmatprep.subr.mxu0 0.0
      %891 = vmatpush2.msra.mxu0 0.0
      %892 = vmatprep.subr.mxu0 0.0
      %893 = vmatpush2.msra.mxu0 0.0
      %894 = vmatprep.subr.mxu0 0.0
      %895 = vmatpush2.msra.mxu0 0.0
      %896 = vmatprep.subr.mxu0 0.0
      %897 = vmatpush2.msra.mxu0 0.0
      %898 = vmatprep.subr.mxu0 0.0
      %899 = vmatpush2.msra.mxu0 0.0
      %900 = vmatprep.subr.mxu0 0.0
      %901 = vmatpush2.msra.mxu0 0.0
      %902 = vmatprep.subr.mxu0 0.0
      %903 = vmatpush2.msra.mxu0 0.0
      %904 = vmatprep.subr.mxu0 0.0
      %905 = vmatpush2.msra.mxu0 0.0
      %906 = vmatprep.subr.mxu0 0.0
      %907 = vmatpush2.msra.mxu0 0.0
      %908 = vmatprep.subr.mxu0 0.0
      %909 = vmatpush2.msra.mxu0 0.0
      %910 = vmatprep.subr.mxu0 0.0
      %911 = vmatpush2.msra.mxu0 0.0
      %912 = vmatprep.subr.mxu0 0.0
      %913 = vmatpush2.msra.mxu0 0.0
      %914 = vmatprep.subr.mxu0 0.0
      %915 = vmatpush2.msra.mxu0 0.0
      %916 = vmatprep.mubr.f32.mxu0 0.0
      %917 = vmatmul.mubr.f32.gmra.mxu0 %v850
      %v918 = vpop.f32.mrf.mxu0
      %v919 = vadd.f32 0.0, %v918
      %v920 = vpop.f32.mrf.mxu0
      %921 = vdwg.mxu0
      %922 = vrot.lane.b32.xlu0 %v501, 112
      %v923 = vpop.permute.xlu0 %922
      %924 = vrot.lane.b32.xlu0 %v585, 112
      %v925 = vpop.permute.xlu0 %924
      %v926 = vsel %vm588, %v923, 0
      %v928 = vsel %vm588, %v925, 0
      %930 = vmatprep.subr.mxu0 0.0
      %931 = vmatpush1.xpose.msra.mxu0 0.0
      %932 = vmatprep.subr.mxu0 0.0
      %933 = vmatpush1.xpose.msra.mxu0 0.0
      %934 = vmatprep.subr.mxu0 0.0
      %935 = vmatpush1.xpose.msra.mxu0 0.0
      %936 = vmatprep.subr.mxu0 0.0
      %937 = vmatpush1.xpose.msra.mxu0 0.0
      %938 = vmatprep.subr.mxu0 0.0
      %939 = vmatpush1.xpose.msra.mxu0 0.0
      %940 = vmatprep.subr.mxu0 0.0
      %941 = vmatpush1.xpose.msra.mxu0 0.0
      %942 = vmatprep.subr.mxu0 0.0
      %943 = vmatpush1.xpose.msra.mxu0 0.0
      %944 = vmatprep.subr.mxu0 0.0
      %945 = vmatpush1.xpose.msra.mxu0 0.0
      %946 = vmatprep.subr.mxu0 0.0
      %947 = vmatpush1.xpose.msra.mxu0 0.0
      %948 = vmatprep.subr.mxu0 0.0
      %949 = vmatpush1.xpose.msra.mxu0 0.0
      %950 = vmatprep.subr.mxu0 0.0
      %951 = vmatpush1.xpose.msra.mxu0 0.0
      %952 = vmatprep.subr.mxu0 0.0
      %953 = vmatpush1.xpose.msra.mxu0 0.0
      %954 = vmatprep.subr.mxu0 0.0
      %955 = vmatpush1.xpose.msra.mxu0 0.0
      %956 = vmatprep.subr.mxu0 0.0
      %957 = vmatpush1.xpose.msra.mxu0 0.0
      %958 = vmatprep.subr.mxu0 0.0
      %959 = vmatpush1.xpose.msra.mxu0 0.0
      %960 = vmatprep.subr.mxu0 0.0
      %961 = vmatpush1.xpose.msra.mxu0 %v928
      %962 = vmatprep.subr.mxu0 0.0
      %963 = vmatpush2.xpose.msra.mxu0 0.0
      %964 = vmatprep.subr.mxu0 0.0
      %965 = vmatpush2.xpose.msra.mxu0 0.0
      %966 = vmatprep.subr.mxu0 0.0
      %967 = vmatpush2.xpose.msra.mxu0 0.0
      %968 = vmatprep.subr.mxu0 0.0
      %969 = vmatpush2.xpose.msra.mxu0 0.0
      %970 = vmatprep.subr.mxu0 0.0
      %971 = vmatpush2.xpose.msra.mxu0 0.0
      %972 = vmatprep.subr.mxu0 0.0
      %973 = vmatpush2.xpose.msra.mxu0 0.0
      %974 = vmatprep.subr.mxu0 0.0
      %975 = vmatpush2.xpose.msra.mxu0 0.0
      %976 = vmatprep.subr.mxu0 0.0
      %977 = vmatpush2.xpose.msra.mxu0 0.0
      %978 = vmatprep.subr.mxu0 0.0
      %979 = vmatpush2.xpose.msra.mxu0 0.0
      %980 = vmatprep.subr.mxu0 0.0
      %981 = vmatpush2.xpose.msra.mxu0 0.0
      %982 = vmatprep.subr.mxu0 0.0
      %983 = vmatpush2.xpose.msra.mxu0 0.0
      %984 = vmatprep.subr.mxu0 0.0
      %985 = vmatpush2.xpose.msra.mxu0 0.0
      %986 = vmatprep.subr.mxu0 0.0
      %987 = vmatpush2.xpose.msra.mxu0 0.0
      %988 = vmatprep.subr.mxu0 0.0
      %989 = vmatpush2.xpose.msra.mxu0 0.0
      %990 = vmatprep.subr.mxu0 0.0
      %991 = vmatpush2.xpose.msra.mxu0 0.0
      %992 = vmatprep.subr.mxu0 0.0
      %993 = vmatpush2.xpose.msra.mxu0 0.0
      %994 = vmatprep.mubr.f32.mxu0 0.0
      %995 = vmatmul.mubr.f32.gmra.mxu0 %v926
      %v996 = vpop.f32.mrf.mxu0
      %v997 = vadd.f32 0.0, %v996
      %v998 = vpop.f32.mrf.mxu0
      %999 = vdwg.mxu0
      %v1000 = vsel %vm665, -1e+20, %v997
      %v1001 = vmul.f32 %v1000, 0.17677669
      %v1002 = vsel %vm588, %v1001, -inf
      %1003 = vmax.xlane.f32.xlu0 %v1002
      %v1004 = vpop.xlane.xlu0 %1003
      %v1005 = vsub.f32 %v1001, %v1004
      %v1006 = vmul.f32 %v1005, 1.442695
      %v1007 = vpow.pop %v1006
      %v1008 = vsel %vm588, %v1007, 0.0
      %1009 = vadd.xlane.f32.xlu0 %v1008
      %v1010 = vpop.xlane.xlu0 %1009
      %v1011 = vrcp.pop %v1010
      %v1012 = vmul.f32 %v1007, %v1011
      %1013 = vrot.lane.b32.xlu0 %v585, 80
      %v1014 = vpop.permute.xlu0 %1013
      %v1017 = vsel %vm588, %v1012, 0
      %1019 = vmatprep.subr.mxu0 0.0
      %1020 = vmatpush1.msra.mxu0 0.0
      %1021 = vmatprep.subr.mxu0 0.0
      %1022 = vmatpush1.msra.mxu0 0.0
      %1023 = vmatprep.subr.mxu0 0.0
      %1024 = vmatpush1.msra.mxu0 0.0
      %1025 = vmatprep.subr.mxu0 0.0
      %1026 = vmatpush1.msra.mxu0 0.0
      %1027 = vmatprep.subr.mxu0 0.0
      %1028 = vmatpush1.msra.mxu0 0.0
      %1029 = vmatprep.subr.mxu0 0.0
      %1030 = vmatpush1.msra.mxu0 0.0
      %1031 = vmatprep.subr.mxu0 0.0
      %1032 = vmatpush1.msra.mxu0 0.0
      %1033 = vmatprep.subr.mxu0 0.0
      %1034 = vmatpush1.msra.mxu0 0.0
      %1035 = vmatprep.subr.mxu0 0.0
      %1036 = vmatpush1.msra.mxu0 0.0
      %1037 = vmatprep.subr.mxu0 0.0
      %1038 = vmatpush1.msra.mxu0 0.0
      %1039 = vmatprep.subr.mxu0 0.0
      %1040 = vmatpush1.msra.mxu0 0.0
      %1041 = vmatprep.subr.mxu0 0.0
      %1042 = vmatpush1.msra.mxu0 0.0
      %1043 = vmatprep.subr.mxu0 0.0
      %1044 = vmatpush1.msra.mxu0 0.0
      %1045 = vmatprep.subr.mxu0 0.0
      %1046 = vmatpush1.msra.mxu0 0.0
      %1047 = vmatprep.subr.mxu0 0.0
      %1048 = vmatpush1.msra.mxu0 0.0
      %1049 = vmatprep.subr.mxu0 0.0
      %1050 = vmatpush1.msra.mxu0 %v1014
      %1051 = vmatprep.subr.mxu0 0.0
      %1052 = vmatpush2.msra.mxu0 0.0
      %1053 = vmatprep.subr.mxu0 0.0
      %1054 = vmatpush2.msra.mxu0 0.0
      %1055 = vmatprep.subr.mxu0 0.0
      %1056 = vmatpush2.msra.mxu0 0.0
      %1057 = vmatprep.subr.mxu0 0.0
      %1058 = vmatpush2.msra.mxu0 0.0
      %1059 = vmatprep.subr.mxu0 0.0
      %1060 = vmatpush2.msra.mxu0 0.0
      %1061 = vmatprep.subr.mxu0 0.0
      %1062 = vmatpush2.msra.mxu0 0.0
      %1063 = vmatprep.subr.mxu0 0.0
      %1064 = vmatpush2.msra.mxu0 0.0
      %1065 = vmatprep.subr.mxu0 0.0
      %1066 = vmatpush2.msra.mxu0 0.0
      %1067 = vmatprep.subr.mxu0 0.0
      %1068 = vmatpush2.msra.mxu0 0.0
      %1069 = vmatprep.subr.mxu0 0.0
      %1070 = vmatpush2.msra.mxu0 0.0
      %1071 = vmatprep.subr.mxu0 0.0
      %1072 = vmatpush2.msra.mxu0 0.0
      %1073 = vmatprep.subr.mxu0 0.0
      %1074 = vmatpush2.msra.mxu0 0.0
      %1075 = vmatprep.subr.mxu0 0.0
      %1076 = vmatpush2.msra.mxu0 0.0
      %1077 = vmatprep.subr.mxu0 0.0
      %1078 = vmatpush2.msra.mxu0 0.0
      %1079 = vmatprep.subr.mxu0 0.0
      %1080 = vmatpush2.msra.mxu0 0.0
      %1081 = vmatprep.subr.mxu0 0.0
      %1082 = vmatpush2.msra.mxu0 0.0
      %1083 = vmatprep.mubr.f32.mxu0 0.0
      %1084 = vmatmul.mubr.f32.gmra.mxu0 %v1017
      %v1085 = vpop.f32.mrf.mxu0
      %v1086 = vadd.f32 0.0, %v1085
      %v1087 = vpop.f32.mrf.mxu0
      %1088 = vdwg.mxu0
      %1089 = vrot.lane.b32.xlu0 %v501, 104
      %v1090 = vpop.permute.xlu0 %1089
      %1091 = vrot.lane.b32.xlu0 %v585, 104
      %v1092 = vpop.permute.xlu0 %1091
      %v1093 = vsel %vm588, %v1090, 0
      %v1095 = vsel %vm588, %v1092, 0
      %1097 = vmatprep.subr.mxu0 0.0
      %1098 = vmatpush1.xpose.msra.mxu0 0.0
      %1099 = vmatprep.subr.mxu0 0.0
      %1100 = vmatpush1.xpose.msra.mxu0 0.0
      %1101 = vmatprep.subr.mxu0 0.0
      %1102 = vmatpush1.xpose.msra.mxu0 0.0
      %1103 = vmatprep.subr.mxu0 0.0
      %1104 = vmatpush1.xpose.msra.mxu0 0.0
      %1105 = vmatprep.subr.mxu0 0.0
      %1106 = vmatpush1.xpose.msra.mxu0 0.0
      %1107 = vmatprep.subr.mxu0 0.0
      %1108 = vmatpush1.xpose.msra.mxu0 0.0
      %1109 = vmatprep.subr.mxu0 0.0
      %1110 = vmatpush1.xpose.msra.mxu0 0.0
      %1111 = vmatprep.subr.mxu0 0.0
      %1112 = vmatpush1.xpose.msra.mxu0 0.0
      %1113 = vmatprep.subr.mxu0 0.0
      %1114 = vmatpush1.xpose.msra.mxu0 0.0
      %1115 = vmatprep.subr.mxu0 0.0
      %1116 = vmatpush1.xpose.msra.mxu0 0.0
      %1117 = vmatprep.subr.mxu0 0.0
      %1118 = vmatpush1.xpose.msra.mxu0 0.0
      %1119 = vmatprep.subr.mxu0 0.0
      %1120 = vmatpush1.xpose.msra.mxu0 0.0
      %1121 = vmatprep.subr.mxu0 0.0
      %1122 = vmatpush1.xpose.msra.mxu0 0.0
      %1123 = vmatprep.subr.mxu0 0.0
      %1124 = vmatpush1.xpose.msra.mxu0 0.0
      %1125 = vmatprep.subr.mxu0 0.0
      %1126 = vmatpush1.xpose.msra.mxu0 0.0
      %1127 = vmatprep.subr.mxu0 0.0
      %1128 = vmatpush1.xpose.msra.mxu0 %v1095
      %1129 = vmatprep.subr.mxu0 0.0
      %1130 = vmatpush2.xpose.msra.mxu0 0.0
      %1131 = vmatprep.subr.mxu0 0.0
      %1132 = vmatpush2.xpose.msra.mxu0 0.0
      %1133 = vmatprep.subr.mxu0 0.0
      %1134 = vmatpush2.xpose.msra.mxu0 0.0
      %1135 = vmatprep.subr.mxu0 0.0
      %1136 = vmatpush2.xpose.msra.mxu0 0.0
      %1137 = vmatprep.subr.mxu0 0.0
      %1138 = vmatpush2.xpose.msra.mxu0 0.0
      %1139 = vmatprep.subr.mxu0 0.0
      %1140 = vmatpush2.xpose.msra.mxu0 0.0
      %1141 = vmatprep.subr.mxu0 0.0
      %1142 = vmatpush2.xpose.msra.mxu0 0.0
      %1143 = vmatprep.subr.mxu0 0.0
      %1144 = vmatpush2.xpose.msra.mxu0 0.0
      %1145 = vmatprep.subr.mxu0 0.0
      %1146 = vmatpush2.xpose.msra.mxu0 0.0
      %1147 = vmatprep.subr.mxu0 0.0
      %1148 = vmatpush2.xpose.msra.mxu0 0.0
      %1149 = vmatprep.subr.mxu0 0.0
      %1150 = vmatpush2.xpose.msra.mxu0 0.0
      %1151 = vmatprep.subr.mxu0 0.0
      %1152 = vmatpush2.xpose.msra.mxu0 0.0
      %1153 = vmatprep.subr.mxu0 0.0
      %1154 = vmatpush2.xpose.msra.mxu0 0.0
      %1155 = vmatprep.subr.mxu0 0.0
      %1156 = vmatpush2.xpose.msra.mxu0 0.0
      %1157 = vmatprep.subr.mxu0 0.0
      %1158 = vmatpush2.xpose.msra.mxu0 0.0
      %1159 = vmatprep.subr.mxu0 0.0
      %1160 = vmatpush2.xpose.msra.mxu0 0.0
      %1161 = vmatprep.mubr.f32.mxu0 0.0
      %1162 = vmatmul.mubr.f32.gmra.mxu0 %v1093
      %v1163 = vpop.f32.mrf.mxu0
      %v1164 = vadd.f32 0.0, %v1163
      %v1165 = vpop.f32.mrf.mxu0
      %1166 = vdwg.mxu0
      %v1167 = vsel %vm665, -1e+20, %v1164
      %v1168 = vmul.f32 %v1167, 0.17677669
      %v1169 = vsel %vm588, %v1168, -inf
      %1170 = vmax.xlane.f32.xlu0 %v1169
      %v1171 = vpop.xlane.xlu0 %1170
      %v1172 = vsub.f32 %v1168, %v1171
      %v1173 = vmul.f32 %v1172, 1.442695
      %v1174 = vpow.pop %v1173
      %v1175 = vsel %vm588, %v1174, 0.0
      %1176 = vadd.xlane.f32.xlu0 %v1175
      %v1177 = vpop.xlane.xlu0 %1176
      %v1178 = vrcp.pop %v1177
      %v1179 = vmul.f32 %v1174, %v1178
      %1180 = vrot.lane.b32.xlu0 %v585, 72
      %v1181 = vpop.permute.xlu0 %1180
      %v1184 = vsel %vm588, %v1179, 0
      %1186 = vmatprep.subr.mxu0 0.0
      %1187 = vmatpush1.msra.mxu0 0.0
      %1188 = vmatprep.subr.mxu0 0.0
      %1189 = vmatpush1.msra.mxu0 0.0
      %1190 = vmatprep.subr.mxu0 0.0
      %1191 = vmatpush1.msra.mxu0 0.0
      %1192 = vmatprep.subr.mxu0 0.0
      %1193 = vmatpush1.msra.mxu0 0.0
      %1194 = vmatprep.subr.mxu0 0.0
      %1195 = vmatpush1.msra.mxu0 0.0
      %1196 = vmatprep.subr.mxu0 0.0
      %1197 = vmatpush1.msra.mxu0 0.0
      %1198 = vmatprep.subr.mxu0 0.0
      %1199 = vmatpush1.msra.mxu0 0.0
      %1200 = vmatprep.subr.mxu0 0.0
      %1201 = vmatpush1.msra.mxu0 0.0
      %1202 = vmatprep.subr.mxu0 0.0
      %1203 = vmatpush1.msra.mxu0 0.0
      %1204 = vmatprep.subr.mxu0 0.0
      %1205 = vmatpush1.msra.mxu0 0.0
      %1206 = vmatprep.subr.mxu0 0.0
      %1207 = vmatpush1.msra.mxu0 0.0
      %1208 = vmatprep.subr.mxu0 0.0
      %1209 = vmatpush1.msra.mxu0 0.0
      %1210 = vmatprep.subr.mxu0 0.0
      %1211 = vmatpush1.msra.mxu0 0.0
      %1212 = vmatprep.subr.mxu0 0.0
      %1213 = vmatpush1.msra.mxu0 0.0
      %1214 = vmatprep.subr.mxu0 0.0
      %1215 = vmatpush1.msra.mxu0 0.0
      %1216 = vmatprep.subr.mxu0 0.0
      %1217 = vmatpush1.msra.mxu0 %v1181
      %1218 = vmatprep.subr.mxu0 0.0
      %1219 = vmatpush2.msra.mxu0 0.0
      %1220 = vmatprep.subr.mxu0 0.0
      %1221 = vmatpush2.msra.mxu0 0.0
      %1222 = vmatprep.subr.mxu0 0.0
      %1223 = vmatpush2.msra.mxu0 0.0
      %1224 = vmatprep.subr.mxu0 0.0
      %1225 = vmatpush2.msra.mxu0 0.0
      %1226 = vmatprep.subr.mxu0 0.0
      %1227 = vmatpush2.msra.mxu0 0.0
      %1228 = vmatprep.subr.mxu0 0.0
      %1229 = vmatpush2.msra.mxu0 0.0
      %1230 = vmatprep.subr.mxu0 0.0
      %1231 = vmatpush2.msra.mxu0 0.0
      %1232 = vmatprep.subr.mxu0 0.0
      %1233 = vmatpush2.msra.mxu0 0.0
      %1234 = vmatprep.subr.mxu0 0.0
      %1235 = vmatpush2.msra.mxu0 0.0
      %1236 = vmatprep.subr.mxu0 0.0
      %1237 = vmatpush2.msra.mxu0 0.0
      %1238 = vmatprep.subr.mxu0 0.0
      %1239 = vmatpush2.msra.mxu0 0.0
      %1240 = vmatprep.subr.mxu0 0.0
      %1241 = vmatpush2.msra.mxu0 0.0
      %1242 = vmatprep.subr.mxu0 0.0
      %1243 = vmatpush2.msra.mxu0 0.0
      %1244 = vmatprep.subr.mxu0 0.0
      %1245 = vmatpush2.msra.mxu0 0.0
      %1246 = vmatprep.subr.mxu0 0.0
      %1247 = vmatpush2.msra.mxu0 0.0
      %1248 = vmatprep.subr.mxu0 0.0
      %1249 = vmatpush2.msra.mxu0 0.0
      %1250 = vmatprep.mubr.f32.mxu0 0.0
      %1251 = vmatmul.mubr.f32.gmra.mxu0 %v1184
      %v1252 = vpop.f32.mrf.mxu0
      %v1253 = vadd.f32 0.0, %v1252
      %v1254 = vpop.f32.mrf.mxu0
      %1255 = vdwg.mxu0
      %1257 = vrot.lane.b32.xlu0 %v919, 8
      %v1258 = vpop.permute.xlu0 %1257
      %1261 = vrot.lane.b32.xlu0 %v1086, 16
      %v1262 = vpop.permute.xlu0 %1261
      %1265 = vrot.lane.b32.xlu0 %v1253, 24
      %v1266 = vpop.permute.xlu0 %1265
      %v1268 = vsel %vm588, %v752, %v1258
      %vm1269 = vcmask 130048
      %v1270 = vsel %vm1269, %v1268, %v1262
      %vm1271 = vcmask 195584
      %v1272 = vsel %vm1271, %v1270, %v1266
      %v1273 = vld [vmem:[%s7] sm:$0xff]
      %v1274 = vld [vmem:[%s7 + $0x8] sm:$0xff]
      %v1275 = vld [vmem:[%s7 + $0x10] sm:$0xff]
      %v1276 = vld [vmem:[%s7 + $0x18] sm:$0xff]
      %v1277 = vld [vmem:[%s8] sm:$0x1]
      %v1279 = vlaneseq
      %v1280 = vshrl.u32 %v1279, 7
      %v1281 = vsub.s32 0, %v1280
      %v1282 = vrot.slane %v1277, %v1281
      %v1285 = vsel %vm430, %v1272, 0
      %1287 = vmatprep.subr.mxu0 0.0
      %1288 = vmatpush1.msra.mxu0 0.0
      %1289 = vmatprep.subr.mxu0 0.0
      %1290 = vmatpush1.msra.mxu0 0.0
      %1291 = vmatprep.subr.mxu0 0.0
      %1292 = vmatpush1.msra.mxu0 0.0
      %1293 = vmatprep.subr.mxu0 0.0
      %1294 = vmatpush1.msra.mxu0 0.0
      %1295 = vmatprep.subr.mxu0 0.0
      %1296 = vmatpush1.msra.mxu0 0.0
      %1297 = vmatprep.subr.mxu0 0.0
      %1298 = vmatpush1.msra.mxu0 0.0
      %1299 = vmatprep.subr.mxu0 0.0
      %1300 = vmatpush1.msra.mxu0 0.0
      %1301 = vmatprep.subr.mxu0 0.0
      %1302 = vmatpush1.msra.mxu0 0.0
      %1303 = vmatprep.subr.mxu0 0.0
      %1304 = vmatpush1.msra.mxu0 0.0
      %1305 = vmatprep.subr.mxu0 0.0
      %1306 = vmatpush1.msra.mxu0 0.0
      %1307 = vmatprep.subr.mxu0 0.0
      %1308 = vmatpush1.msra.mxu0 0.0
      %1309 = vmatprep.subr.mxu0 0.0
      %1310 = vmatpush1.msra.mxu0 0.0
      %1311 = vmatprep.subr.mxu0 0.0
      %1312 = vmatpush1.msra.mxu0 %v1276
      %1313 = vmatprep.subr.mxu0 0.0
      %1314 = vmatpush1.msra.mxu0 %v1275
      %1315 = vmatprep.subr.mxu0 0.0
      %1316 = vmatpush1.msra.mxu0 %v1274
      %1317 = vmatprep.subr.mxu0 0.0
      %1318 = vmatpush1.msra.mxu0 %v1273
      %1319 = vmatprep.subr.mxu0 0.0
      %1320 = vmatpush2.msra.mxu0 0.0
      %1321 = vmatprep.subr.mxu0 0.0
      %1322 = vmatpush2.msra.mxu0 0.0
      %1323 = vmatprep.subr.mxu0 0.0
      %1324 = vmatpush2.msra.mxu0 0.0
      %1325 = vmatprep.subr.mxu0 0.0
      %1326 = vmatpush2.msra.mxu0 0.0
      %1327 = vmatprep.subr.mxu0 0.0
      %1328 = vmatpush2.msra.mxu0 0.0
      %1329 = vmatprep.subr.mxu0 0.0
      %1330 = vmatpush2.msra.mxu0 0.0
      %1331 = vmatprep.subr.mxu0 0.0
      %1332 = vmatpush2.msra.mxu0 0.0
      %1333 = vmatprep.subr.mxu0 0.0
      %1334 = vmatpush2.msra.mxu0 0.0
      %1335 = vmatprep.subr.mxu0 0.0
      %1336 = vmatpush2.msra.mxu0 0.0
      %1337 = vmatprep.subr.mxu0 0.0
      %1338 = vmatpush2.msra.mxu0 0.0
      %1339 = vmatprep.subr.mxu0 0.0
      %1340 = vmatpush2.msra.mxu0 0.0
      %1341 = vmatprep.subr.mxu0 0.0
      %1342 = vmatpush2.msra.mxu0 0.0
      %1343 = vmatprep.subr.mxu0 0.0
      %1344 = vmatpush2.msra.mxu0 0.0
      %1345 = vmatprep.subr.mxu0 0.0
      %1346 = vmatpush2.msra.mxu0 0.0
      %1347 = vmatprep.subr.mxu0 0.0
      %1348 = vmatpush2.msra.mxu0 0.0
      %1349 = vmatprep.subr.mxu0 0.0
      %1350 = vmatpush2.msra.mxu0 0.0
      %1351 = vmatprep.mubr.f32.mxu0 0.0
      %1352 = vmatmul.mubr.f32.gmra.mxu0 %v1285
      %v1353 = vpop.f32.mrf.mxu0
      %v1354 = vadd.f32 %v1282, %v1353
      %v1355 = vpop.f32.mrf.mxu0
      %1356 = vdwg.mxu0
      %v1357 = vadd.f32 %v1354, %v416
      %v1358 = vsel %vm430, %v1357, 0.0
      %1359 = vadd.xlane.f32.xlu0 %v1358
      %v1360 = vpop.xlane.xlu0 %1359
      %v1361 = vrcp.pop 32.0
      %v1362 = vmul.f32 %v1360, %v1361
      %v1363 = vsub.f32 %v1357, %v1362
      %v1364 = vmul.f32 %v1363, %v1363
      %v1365 = vsel %vm430, %v1364, 0.0
      %1366 = vadd.xlane.f32.xlu0 %v1365
      %v1367 = vpop.xlane.xlu0 %1366
      %v1368 = vmul.f32 %v1367, %v1361
      %v1369 = vadd.f32 %v1368, 1e-05
      %v1370 = vrsqrt.pop %v1369
      %v1371 = vmul.f32 %v1363, %v1370
      %v1372 = vld [vmem:[%s9] sm:$0x1]
      %v1374 = vlaneseq
      %v1375 = vshrl.u32 %v1374, 7
      %v1376 = vsub.s32 0, %v1375
      %v1377 = vrot.slane %v1372, %v1376
      %v1379 = vmul.f32 %v1371, %v1377
      %v1380 = vld [vmem:[%s10] sm:$0x1]
      %v1382 = vlaneseq
      %v1383 = vshrl.u32 %v1382, 7
      %v1384 = vsub.s32 0, %v1383
      %v1385 = vrot.slane %v1380, %v1384
      %v1387 = vadd.f32 %v1379, %v1385
      %1388 = vst.msk [vmem:[%s415] sm:$0xff] %vm430, %v1387
      %p1389 = scmp.lt.s32.totalorder %s22, 1
      %s1390 = scalar_select %p1389, %s22, 1
      %s1391 = smul.addr %s1390, 8
      %s1392 = scalar_lea.vmem %s11, %s1391
      // Predicated region
      $region65: #{decoder_forward.7} parent=63 // pred_check
        %p1393 = pneg %p286
      $region66: #{decoder_forward.7} parent=63 // pred_check_branch
        %1395 = sbr.rel (%p1393) target = $region68
      $region67: #{decoder_forward.7} parent=63 // pred_region
        _
      $region68: #{decoder_forward.7} parent=63 // pred_fallthru
        _
    $region64: #{decoder_forward.7} parent=5 // pred_fallthru
      _
    %p1396 = scmp.le.s32.totalorder 2, %s17
    // Predicated region
    $region69: #{decoder_forward.7} parent=5 // pred_check
      %p1397 = pneg %p1396
    $region70: #{decoder_forward.7} parent=5 // pred_check_branch
      %1399 = sbr.rel (%p1397) target = $region72
    $region71: #{decoder_forward.7} parent=5 // pred_region
      %s1400 = ssub.s32 %s17, 2
      // Predicated region
      $region73: #{decoder_forward.7} parent=71 // pred_check
        %p1401 = pneg %p292
      $region74: #{decoder_forward.7} parent=71 // pred_check_branch
        %1403 = sbr.rel (%p1401) target = $region76
      $region75: #{decoder_forward.7} parent=71 // pred_region
        %p1404 = scmp.lt.s32.totalorder %s23, 1
        %s1405 = scalar_select %p1404, %s23, 1
        %s1406 = smul.addr %s1405, 8
        %s1407 = scalar_lea.vmem %s11, %s1406
      $region76: #{decoder_forward.7} parent=71 // pred_fallthru
        _
    $region72: #{decoder_forward.7} parent=5 // pred_fallthru
      _
  $region6: #{decoder_forward.7} parent=0 // loop_footer
    %s21 = sadd.s32 1, %s17
  $region7: #{decoder_forward.7} parent=0 // loop_footer_branch
    %16 = sbr.rel target = $region3
  $region8: #{decoder_forward.7} parent=0 // loop_exit
    _

</llo_original>
